<compile_context>
chip_gen: v6e
topology: v6e:2x2x1
jax: 0.10.0
libtpu: 0.0.40
codegen_flags: <defaults>
</compile_context>

<pallas_src>
import jax
import jax.numpy as jnp
from jax import lax
from jax.experimental import pallas as pl
from jax.experimental.pallas import tpu as pltpu


# ---------------------------------------------------------------------------
# Per-generation VMEM budget: ~48 MiB on v7x (64 MiB/core), ~96 MiB on v5e/v6e.
# ---------------------------------------------------------------------------
def _vmem_budget_bytes():
    cap = 64 * 1024 * 1024
    try:
        info = pltpu.get_tpu_info()
        cap = int(getattr(info, "vmem_capacity_bytes", cap) or cap)
    except Exception:
        pass  # keep the v7x-safe default
    budget = (cap * 3) // 4
    return int(min(max(budget, 32 * 1024 * 1024), 100 * 1024 * 1024))


# ---------------------------------------------------------------------------
# Fused single-kernel path (A resident in VMEM; A read from HBM exactly once).
# ---------------------------------------------------------------------------
def _fused_kernel(x_ref, adj_ref, w_ref, b_ref, wc_ref, bc_ref,
                  xgnn_ref, s_ref, xass_ref, adjass_ref, ent_ref, fnorm_ref):
    a = adj_ref[...].astype(jnp.float32)           # (N, N), f32 math throughout
    xv = x_ref[...]                                # (N, Fin)
    n = a.shape[0]

    deg = jnp.sum(a, axis=1, keepdims=True) + 1.0  # self-loop => deg >= 1 (inf guard dead)
    dinv = lax.rsqrt(deg)
    y = dinv * jnp.dot(xv, w_ref[...], preferred_element_type=jnp.float32)
    z = jnp.dot(a, y, preferred_element_type=jnp.float32) + y      # (A + I) y
    h = jnp.maximum(dinv * z + b_ref[...], 0.0)    # relu (applied twice in torch; idempotent)
    xgnn_ref[...] = h

    logits = jnp.dot(h, wc_ref[...], preferred_element_type=jnp.float32) + bc_ref[...]
    m = jnp.max(logits, axis=-1, keepdims=True)
    e = jnp.exp(logits - m)
    s = e / jnp.sum(e, axis=-1, keepdims=True)     # exact normalization
    s_ref[...] = s

    # entropy of softmax(S)  (double softmax matches the torch reference)
    m2 = jnp.max(s, axis=-1, keepdims=True)
    e2 = jnp.exp(s - m2)
    p = e2 / jnp.sum(e2, axis=-1, keepdims=True)
    ent_ref[...] = (-1.0 / n) * jnp.sum(p * jnp.log(p + 1e-10), keepdims=True)

    dims_t = (((0,), (0,)), ((), ()))              # contract node axis (no transposes)
    xass_ref[...] = lax.dot_general(s, xv, dims_t, preferred_element_type=jnp.float32)
    c = lax.dot_general(s, a, dims_t, preferred_element_type=jnp.float32)       # S^T A
    adjass_ref[...] = jnp.dot(c, s, preferred_element_type=jnp.float32)         # S^T A S

    # fnorm computed directly (A is resident) -> no trace-identity cancellation
    dims_l = (((1,), (1,)), ((), ()))
    r = lax.dot_general(s, s, dims_l, preferred_element_type=jnp.float32) - a   # S S^T - A
    fnorm_ref[...] = jnp.sqrt(jnp.sum(r * r, keepdims=True))


def _diffpool_fused(x, adj_s, w, b2, wc, bc2, vmem_budget):
    N, Fin = x.shape
    Cout = w.shape[1]
    K = wc.shape[1]

    def spec2(r, c):
        return pl.BlockSpec((r, c), lambda i: (0, 0))

    out_shapes = (
        jax.ShapeDtypeStruct((N, Cout), jnp.float32),   # x_gnn
        jax.ShapeDtypeStruct((N, K), jnp.float32),      # cluster_assignments
        jax.ShapeDtypeStruct((K, Fin), jnp.float32),    # x_ass
        jax.ShapeDtypeStruct((K, K), jnp.float32),      # adj_ass
        jax.ShapeDtypeStruct((1, 1), jnp.float32),      # entropy_mean
        jax.ShapeDtypeStruct((1, 1), jnp.float32),      # f_norm_adj
    )
    x_gnn, s, x_ass, adj_ass, ent, fnorm = pl.pallas_call(
        _fused_kernel,
        out_shape=out_shapes,
        grid_spec=pltpu.PrefetchScalarGridSpec(
            num_scalar_prefetch=0, grid=(1,),
            in_specs=[spec2(N, Fin), spec2(N, N), spec2(Fin, Cout),
                      spec2(1, Cout), spec2(Cout, K), spec2(1, K)],
            out_specs=[spec2(N, Cout), spec2(N, K), spec2(K, Fin),
                       spec2(K, K), spec2(1, 1), spec2(1, 1)]),
        compiler_params=pltpu.CompilerParams(
            dimension_semantics=("arbitrary",),
            vmem_limit_bytes=vmem_budget),
        cost_estimate=pl.CostEstimate(
            flops=int(2 * N * Fin * Cout + 2 * N * N * (Cout + 2 * K)
                      + 2 * N * K * (Fin + Cout + K)),
            transcendentals=int(3 * N * K + N),
            bytes_accessed=int(adj_s.dtype.itemsize * N * N
                               + 4 * (N * (Fin + Cout + K) + K * (Fin + K)
                                      + Fin * Cout + Cout * K))),
    )(x, adj_s, w, b2, wc, bc2)
    return x_gnn, x_ass, adj_ass, s, ent[0, 0], fnorm[0, 0]


# ---------------------------------------------------------------------------
# Tiled two-phase path (large N): adjacency streamed as (tn, N) row blocks.
# ---------------------------------------------------------------------------
def _gcn_pre_kernel(x_ref, adj_ref, w_ref, y_ref, dinv_ref):
    deg = jnp.sum(adj_ref[...].astype(jnp.float32), axis=1, keepdims=True) + 1.0
    dinv = lax.rsqrt(deg)                          # deg >= 1 -> inf guard is dead code
    xw = jnp.dot(x_ref[...], w_ref[...], preferred_element_type=jnp.float32)
    y_ref[...] = dinv * xw
    dinv_ref[...] = dinv


def _diffpool_tiled_kernel(x_ref, adj_ref, yfull_ref, dinv_ref, b_ref, wc_ref, bc_ref,
                           xgnn_ref, s_ref, xass_ref, cacc_ref, ent_ref, fa2_ref):
    j = pl.program_id(1)                            # row-tile index within this core-group
    tn = x_ref.shape[0]

    @pl.when(j == 0)
    def _init():
        xass_ref[...] = jnp.zeros_like(xass_ref)
        cacc_ref[...] = jnp.zeros_like(cacc_ref)
        ent_ref[...] = jnp.zeros_like(ent_ref)
        fa2_ref[...] = jnp.zeros_like(fa2_ref)

    x_t = x_ref[...]                                # (tn, Fin)
    adj_f = adj_ref[...].astype(jnp.float32)        # streamed bf16 -> f32 once per tile
    dinv_t = dinv_ref[...]                          # (tn, 1)

    # identity term of (A+I) y: slice the resident y (no duplicated y-tile input)
    tile = pl.program_id(0) * pl.num_programs(1) + j
    row0 = tile * tn
    if tn % 8 == 0:
        row0 = pl.multiple_of(row0, 8)
    y_row = yfull_ref[pl.ds(row0, tn), :]

    z = jnp.dot(adj_f, yfull_ref[...], preferred_element_type=jnp.float32) + y_row
    h = jnp.maximum(dinv_t * z + b_ref[...], 0.0)   # relu (idempotent double relu)
    xgnn_ref[...] = h

    logits = jnp.dot(h, wc_ref[...], preferred_element_type=jnp.float32) + bc_ref[...]
    m = jnp.max(logits, axis=-1, keepdims=True)
    e = jnp.exp(logits - m)
    s = e / jnp.sum(e, axis=-1, keepdims=True)      # exact normalization (review feedback)
    s_ref[...] = s

    # entropy of softmax(S): accumulate sum p*log(p+eps); normalized in the epilogue
    m2 = jnp.max(s, axis=-1, keepdims=True)
    e2 = jnp.exp(s - m2)
    p = e2 / jnp.sum(e2, axis=-1, keepdims=True)
    ent_ref[...] += jnp.sum(p * jnp.log(p + 1e-10), keepdims=True)

    # per-core accumulators (contract the node axis; no explicit transposes)
    dims = (((0,), (0,)), ((), ()))
    xass_ref[...] += lax.dot_general(s, x_t, dims, preferred_element_type=jnp.float32)   # (K,Fin)
    cacc_ref[...] += lax.dot_general(s, adj_f, dims, preferred_element_type=jnp.float32)  # (K,N)
    fa2_ref[...] += jnp.sum(adj_f * adj_f, keepdims=True)                                 # ||A||_F^2


def _pick_tile(n, fin, cout, k, adj_itemsize, budget):
    """Largest node-row tile (layout-aligned, divides N) such that everything resident
    plus the double-buffered per-step tiles fits the per-generation VMEM budget."""
    align = 8 if adj_itemsize >= 4 else 16
    if n % align != 0:
        return n                                     # full-array block is always layout-legal
    resident = 4 * (n * cout                         # y (full, resident)
                    + k * (fin + n + k)              # per-core accumulators
                    + cout * (k + 2) + 2 * k + 16)   # weights / biases / scalars
    per_row = 2 * (adj_itemsize * n                  # double-buffered adjacency row block
                   + 4 * (fin + 2 * cout + k + 1))   # x / xgnn / s / dinv tiles
    avail = budget - resident
    if avail <= per_row * align:
        return align
    max_rows = avail // per_row
    best, cand = align, align
    while cand <= n:
        if n % cand == 0 and cand <= max_rows:
            best = cand
        cand += align
    return best


def _diffpool_tiled(x, adj_s, w, b2, wc, bc2, tn, vmem_budget):
    N, Fin = x.shape
    Cout = w.shape[1]
    K = wc.shape[1]
    T = N // tn
    ncores = 2 if (T % 2 == 0 and T >= 2) else 1     # split the reduction across v7x's 2 TCs
    Tc = T // ncores
    adj_bytes = adj_s.dtype.itemsize

    # ---- phase 1: y = dinv * (X @ W),  dinv = (sum(A, 1) + 1)^-1/2 ----
    y, dinv = pl.pallas_call(
        _gcn_pre_kernel,
        out_shape=(jax.ShapeDtypeStruct((N, Cout), jnp.float32),
                   jax.ShapeDtypeStruct((N, 1), jnp.float32)),
        grid_spec=pltpu.PrefetchScalarGridSpec(
            num_scalar_prefetch=0, grid=(T,),
            in_specs=[pl.BlockSpec((tn, Fin), lambda i: (i, 0)),
                      pl.BlockSpec((tn, N), lambda i: (i, 0)),
                      pl.BlockSpec((Fin, Cout), lambda i: (0, 0))],
            out_specs=[pl.BlockSpec((tn, Cout), lambda i: (i, 0)),
                       pl.BlockSpec((tn, 1), lambda i: (i, 0))]),
        compiler_params=pltpu.CompilerParams(
            dimension_semantics=("parallel",),       # independent row tiles -> both TCs
            vmem_limit_bytes=vmem_budget),
        cost_estimate=pl.CostEstimate(
            flops=int(2 * N * Fin * Cout + N * N),
            transcendentals=int(N),
            bytes_accessed=int(adj_bytes * N * N
                               + 4 * (N * Fin + Fin * Cout + N * Cout + N))),
    )(x, adj_s, w)

    # ---- phase 2: propagate + assignments + per-core pooled partials ----
    row_idx = lambda c, j: (c * Tc + j, 0)
    out_shapes = (
        jax.ShapeDtypeStruct((N, Cout), jnp.float32),        # x_gnn
        jax.ShapeDtypeStruct((N, K), jnp.float32),           # cluster_assignments
        jax.ShapeDtypeStruct((ncores, K, Fin), jnp.float32),  # S^T X partials
        jax.ShapeDtypeStruct((ncores, K, N), jnp.float32),    # C = S^T A partials
        jax.ShapeDtypeStruct((ncores, 1, 1), jnp.float32),    # entropy-sum partials
        jax.ShapeDtypeStruct((ncores, 1, 1), jnp.float32),    # ||A||_F^2 partials
    )
    x_gnn, s, xass_p, c_p, ent_p, fa2_p = pl.pallas_call(
        _diffpool_tiled_kernel,
        out_shape=out_shapes,
        grid_spec=pltpu.PrefetchScalarGridSpec(
            num_scalar_prefetch=0, grid=(ncores, Tc),
            in_specs=[pl.BlockSpec((tn, Fin), row_idx),            # x row tile
                      pl.BlockSpec((tn, N), row_idx),              # adjacency row tile (bf16 stream)
                      pl.BlockSpec((N, Cout), lambda c, j: (0, 0)),  # y (full, resident)
                      pl.BlockSpec((tn, 1), row_idx),              # dinv row tile
                      pl.BlockSpec((1, Cout), lambda c, j: (0, 0)),
                      pl.BlockSpec((Cout, K), lambda c, j: (0, 0)),
                      pl.BlockSpec((1, K), lambda c, j: (0, 0))],
            out_specs=[pl.BlockSpec((tn, Cout), row_idx),
                       pl.BlockSpec((tn, K), row_idx),
                       pl.BlockSpec((None, K, Fin), lambda c, j: (c, 0, 0)),
                       pl.BlockSpec((None, K, N), lambda c, j: (c, 0, 0)),
                       pl.BlockSpec((None, 1, 1), lambda c, j: (c, 0, 0)),
                       pl.BlockSpec((None, 1, 1), lambda c, j: (c, 0, 0))]),
        compiler_params=pltpu.CompilerParams(
            dimension_semantics=("parallel", "arbitrary"),   # core split x node-row reduction
            vmem_limit_bytes=vmem_budget),
        cost_estimate=pl.CostEstimate(
            flops=int(2 * N * N * (Cout + K) + 2 * N * K * (Fin + Cout)),
            transcendentals=int(3 * N * K),
            bytes_accessed=int(adj_bytes * N * N
                               + 4 * (N * (Fin + 2 * Cout + K + 1)
                                      + ncores * (K * Fin + K * N + 2)
                                      + Fin * Cout + Cout * K))),
    )(x, adj_s, y, dinv, b2, wc, bc2)

    # ---- tiny XLA epilogue: O(N*K^2) work, negligible vs the N^2 adjacency stream ----
    x_ass = jnp.sum(xass_p, axis=0)                       # (K, Fin)
    c_mat = jnp.sum(c_p, axis=0)                          # (K, N)   C = S^T A
    adj_ass = c_mat @ s                                   # (K, K)   S^T A S
    ent = -jnp.sum(ent_p) / N
    # ||S S^T - A||_F^2 = ||S^T S||_F^2 - 2 tr(S^T A S) + ||A||_F^2
    # NOTE: f32 cancellation can reduce fnorm accuracy when S S^T ~ A; the fused
    # small-N path computes it directly, the large-N path accepts this trade-off.
    sts = s.T @ s
    fro2 = jnp.sum(sts * sts) - 2.0 * jnp.trace(adj_ass) + jnp.sum(fa2_p)
    fnorm = jnp.sqrt(jnp.maximum(fro2, 0.0))
    return x_gnn, x_ass, adj_ass, s, ent, fnorm


# ---------------------------------------------------------------------------
# Public wrapper (matches DiffPoolLayer.forward output order)
# ---------------------------------------------------------------------------
def diffpool_forward(x, adj, w, b, wc, bc, *, tn=None, adj_stream_dtype=jnp.bfloat16):
    """Returns (x_gnn, x_ass, adj_ass, cluster_assignments, entropy_mean, f_norm_adj).

    `wc` is the cluster linear weight pre-transposed to (Cout, K); `b`/`bc` may be 1-D.
    `adj_stream_dtype=bf16` halves the HBM traffic on the dominant N^2 stream and is
    exact for 0/1 adjacencies; pass jnp.float32 for weighted graphs.  Passing `tn`
    forces the tiled two-phase path.
    """
    x = jnp.asarray(x, jnp.float32)
    adj = jnp.asarray(adj, jnp.float32)
    w = jnp.asarray(w, jnp.float32)
    wc = jnp.asarray(wc, jnp.float32)
    b2 = jnp.asarray(b, jnp.float32).reshape(1, -1)
    bc2 = jnp.asarray(bc, jnp.float32).reshape(1, -1)

    N, Fin = x.shape
    Cout = w.shape[1]
    K = wc.shape[1]
    vmem_budget = _vmem_budget_bytes()
    adj_s = adj.astype(adj_stream_dtype)
    adj_bytes = jnp.dtype(adj_stream_dtype).itemsize

    # Fused single-read path if the full adjacency (plus f32 working copies) fits VMEM.
    fused_bytes = (adj_bytes * N * N
                   + 4 * (2 * N * N + N * (Fin + 2 * Cout + K + 2)
                          + K * (N + Fin + K) + Fin * Cout + Cout * K))
    if tn is None and 2 * fused_bytes <= vmem_budget:
        return _diffpool_fused(x, adj_s, w, b2, wc, bc2, vmem_budget)

    if tn is None:
        tn = _pick_tile(N, Fin, Cout, K, adj_bytes, vmem_budget)
    align = 8 if adj_bytes >= 4 else 16
    assert N % tn == 0, "node count must be divisible by the node tile"
    assert tn == N or tn % align == 0, f"tn must be a multiple of {align} (or equal N)"
    return _diffpool_tiled(x, adj_s, w, b2, wc, bc2, tn, vmem_budget)


# ---------------------------------------------------------------------------
# Plain-JAX reference mirroring the PyTorch forward
# ---------------------------------------------------------------------------
def ref_forward(x, adj, w, b, wc, bc):
    N = adj.shape[0]
    adj_i = adj + jnp.eye(N, dtype=jnp.float32)
    deg = adj_i.sum(axis=1)
    dinv = deg ** -0.5
    dinv = jnp.where(jnp.isinf(dinv), 0.0, dinv)
    norm_adj = adj_i * dinv[:, None] * dinv[None, :]
    x_gnn = jax.nn.relu(norm_adj @ (x @ w) + b)
    s = jax.nn.softmax(x_gnn @ wc + bc, axis=-1)
    p = jax.nn.softmax(s, axis=-1)
    ent = (-jnp.sum(p * jnp.log(p + 1e-10), axis=-1)).mean()
    x_ass = s.T @ x
    adj_ass = s.T @ adj @ s
    fnorm = jnp.sqrt(jnp.sum((s @ s.T - adj) ** 2))
    return x_gnn, x_ass, adj_ass, s, ent, fnorm


if __name__ == "__main__":
    N, F_IN, C_OUT, K = 64, 8, 16, 8

    key = jax.random.PRNGKey(0)
    kx, ka, kw, kwc, kbc = jax.random.split(key, 5)

    x = jax.random.normal(kx, (N, F_IN), dtype=jnp.float32)
    a_rand = jax.random.uniform(ka, (N, N), dtype=jnp.float32)
    adj = ((a_rand + a_rand.T) * 0.5 > 0.5).astype(jnp.float32)
    adj = adj * (1.0 - jnp.eye(N, dtype=jnp.float32))            # symmetric, zero diagonal

    # Parameters per module __init__ (cluster Linear weight pre-transposed to (Cout, K)).
    w = jax.random.normal(kw, (F_IN, C_OUT), dtype=jnp.float32)
    b = jnp.zeros((C_OUT,), dtype=jnp.float32)
    wc = 0.1 * jax.random.normal(kwc, (C_OUT, K), dtype=jnp.float32)
    bc = 0.1 * jax.random.normal(kbc, (K,), dtype=jnp.float32)

    refs = ref_forward(x, adj, w, b, wc, bc)
    names = ("x_gnn", "x_ass", "adj_ass", "cluster_assignments", "entropy", "fnorm")

    # 1) fused single-kernel path (A resident, read once)
    outs_fused = jax.block_until_ready(diffpool_forward(x, adj, w, b, wc, bc))
    # 2) tiled two-phase path (bf16 adjacency stream, 2 core-groups x 2 row tiles)
    outs_tiled = jax.block_until_ready(diffpool_forward(x, adj, w, b, wc, bc, tn=16))

    for tag, outs in (("fused", outs_fused), ("tiled", outs_tiled)):
        for name, o, r in zip(names, outs, refs):
            assert jnp.allclose(o, r, atol=2e-3, rtol=2e-3), (tag, name, o, r)

    print("KERNEL_OK")
</pallas_src>

<mosaic_0001>
module attributes {stable_mosaic.version = 11 : i64} {
  func.func @_fused_kernel(%arg0: i32, %arg1: memref<64x8xf32, #tpu.memory_space<vmem>>, %arg2: memref<64x64xbf16, #tpu.memory_space<vmem>>, %arg3: memref<8x16xf32, #tpu.memory_space<vmem>>, %arg4: memref<1x16xf32, #tpu.memory_space<vmem>>, %arg5: memref<16x8xf32, #tpu.memory_space<vmem>>, %arg6: memref<1x8xf32, #tpu.memory_space<vmem>>, %arg7: memref<64x16xf32, #tpu.memory_space<vmem>>, %arg8: memref<64x8xf32, #tpu.memory_space<vmem>>, %arg9: memref<8x8xf32, #tpu.memory_space<vmem>>, %arg10: memref<8x8xf32, #tpu.memory_space<vmem>>, %arg11: memref<1x1xf32, #tpu.memory_space<vmem>>, %arg12: memref<1x1xf32, #tpu.memory_space<vmem>>) attributes {dimension_semantics = [#tpu.dimension_semantics<arbitrary>], iteration_bounds = array<i64: 1>, scalar_prefetch = 0 : i64, scratch_operands = 0 : i64, tpu.core_type = #tpu.core_type<tc>, window_params = [{pipeline_mode = #tpu.pipeline_mode<synchronous>, transform_indices = @transform_0, window_bounds = array<i64: 64, 8>}, {pipeline_mode = #tpu.pipeline_mode<synchronous>, transform_indices = @transform_1, window_bounds = array<i64: 64, 64>}, {pipeline_mode = #tpu.pipeline_mode<synchronous>, transform_indices = @transform_2, window_bounds = array<i64: 8, 16>}, {pipeline_mode = #tpu.pipeline_mode<synchronous>, transform_indices = @transform_3, window_bounds = array<i64: 1, 16>}, {pipeline_mode = #tpu.pipeline_mode<synchronous>, transform_indices = @transform_4, window_bounds = array<i64: 16, 8>}, {pipeline_mode = #tpu.pipeline_mode<synchronous>, transform_indices = @transform_5, window_bounds = array<i64: 1, 8>}, {pipeline_mode = #tpu.pipeline_mode<synchronous>, transform_indices = @transform_6, window_bounds = array<i64: 64, 16>}, {pipeline_mode = #tpu.pipeline_mode<synchronous>, transform_indices = @transform_7, window_bounds = array<i64: 64, 8>}, {pipeline_mode = #tpu.pipeline_mode<synchronous>, transform_indices = @transform_8, window_bounds = array<i64: 8, 8>}, {pipeline_mode = #tpu.pipeline_mode<synchronous>, transform_indices = @transform_9, window_bounds = array<i64: 8, 8>}, {pipeline_mode = #tpu.pipeline_mode<synchronous>, transform_indices = @transform_10, window_bounds = array<i64: 1, 1>}, {pipeline_mode = #tpu.pipeline_mode<synchronous>, transform_indices = @transform_11, window_bounds = array<i64: 1, 1>}]} {
    %c0 = arith.constant 0 : index
    %c0_0 = arith.constant 0 : index
    %0 = vector.load %arg2[%c0, %c0_0] : memref<64x64xbf16, #tpu.memory_space<vmem>>, vector<64x64xbf16>
    %1 = arith.extf %0 : vector<64x64xbf16> to vector<64x64xf32>
    %c0_1 = arith.constant 0 : index
    %c0_2 = arith.constant 0 : index
    %2 = vector.load %arg1[%c0_1, %c0_2] : memref<64x8xf32, #tpu.memory_space<vmem>>, vector<64x8xf32>
    %cst = arith.constant dense<0.000000e+00> : vector<64xf32>
    %3 = vector.multi_reduction <add>, %1, %cst [1] : vector<64x64xf32> to vector<64xf32>
    %4 = vector.shape_cast %3 : vector<64xf32> to vector<64x1xf32>
    %cst_3 = arith.constant 1.000000e+00 : f32
    %5 = vector.broadcast %cst_3 : f32 to vector<64x1xf32>
    %6 = arith.addf %4, %5 : vector<64x1xf32>
    %7 = math.rsqrt %6 : vector<64x1xf32>
    %c0_4 = arith.constant 0 : index
    %c0_5 = arith.constant 0 : index
    %8 = vector.load %arg3[%c0_4, %c0_5] : memref<8x16xf32, #tpu.memory_space<vmem>>, vector<8x16xf32>
    %cst_6 = arith.constant dense<0.000000e+00> : vector<64x16xf32>
    %9 = tpu.matmul %2, %8, %cst_6 {dimension_numbers = #tpu.dot_dimension_numbers<[1], [0], [0], [1], [0, 0, 1, 1], [], []>} : vector<64x8xf32>, vector<8x16xf32>, vector<64x16xf32> -> vector<64x16xf32>
    %10 = vector.broadcast %7 : vector<64x1xf32> to vector<64x16xf32>
    %11 = arith.mulf %10, %9 : vector<64x16xf32>
    %cst_7 = arith.constant dense<0.000000e+00> : vector<64x16xf32>
    %12 = tpu.matmul %1, %11, %cst_7 {dimension_numbers = #tpu.dot_dimension_numbers<[1], [0], [0], [1], [0, 0, 1, 1], [], []>} : vector<64x64xf32>, vector<64x16xf32>, vector<64x16xf32> -> vector<64x16xf32>
    %13 = arith.addf %12, %11 : vector<64x16xf32>
    %14 = vector.broadcast %7 : vector<64x1xf32> to vector<64x16xf32>
    %15 = arith.mulf %14, %13 : vector<64x16xf32>
    %c0_8 = arith.constant 0 : index
    %c0_9 = arith.constant 0 : index
    %16 = vector.load %arg4[%c0_8, %c0_9] : memref<1x16xf32, #tpu.memory_space<vmem>>, vector<1x16xf32>
    %17 = vector.broadcast %16 : vector<1x16xf32> to vector<64x16xf32>
    %18 = arith.addf %15, %17 : vector<64x16xf32>
    %cst_10 = arith.constant 0.000000e+00 : f32
    %19 = vector.broadcast %cst_10 : f32 to vector<64x16xf32>
    %20 = arith.maximumf %18, %19 : vector<64x16xf32>
    %c0_11 = arith.constant 0 : index
    %c0_12 = arith.constant 0 : index
    %21 = vector.load %arg7[%c0_11, %c0_12] : memref<64x16xf32, #tpu.memory_space<vmem>>, vector<64x16xf32>
    tpu.vector_store %arg7[%c0_11, %c0_12], %20 {strides = array<i32>} : memref<64x16xf32, #tpu.memory_space<vmem>>, vector<64x16xf32>,
    %c0_13 = arith.constant 0 : index
    %c0_14 = arith.constant 0 : index
    %22 = vector.load %arg5[%c0_13, %c0_14] : memref<16x8xf32, #tpu.memory_space<vmem>>, vector<16x8xf32>
    %cst_15 = arith.constant dense<0.000000e+00> : vector<64x8xf32>
    %23 = tpu.matmul %20, %22, %cst_15 {dimension_numbers = #tpu.dot_dimension_numbers<[1], [0], [0], [1], [0, 0, 1, 1], [], []>} : vector<64x16xf32>, vector<16x8xf32>, vector<64x8xf32> -> vector<64x8xf32>
    %c0_16 = arith.constant 0 : index
    %c0_17 = arith.constant 0 : index
    %24 = vector.load %arg6[%c0_16, %c0_17] : memref<1x8xf32, #tpu.memory_space<vmem>>, vector<1x8xf32>
    %25 = vector.broadcast %24 : vector<1x8xf32> to vector<64x8xf32>
    %26 = arith.addf %23, %25 : vector<64x8xf32>
    %cst_18 = arith.constant dense<0xFF800000> : vector<64xf32>
    %27 = vector.multi_reduction <maximumf>, %26, %cst_18 [1] : vector<64x8xf32> to vector<64xf32>
    %28 = vector.shape_cast %27 : vector<64xf32> to vector<64x1xf32>
    %29 = vector.broadcast %28 : vector<64x1xf32> to vector<64x8xf32>
    %30 = arith.subf %26, %29 : vector<64x8xf32>
    %31 = math.exp %30 : vector<64x8xf32>
    %cst_19 = arith.constant dense<0.000000e+00> : vector<64xf32>
    %32 = vector.multi_reduction <add>, %31, %cst_19 [1] : vector<64x8xf32> to vector<64xf32>
    %33 = vector.shape_cast %32 : vector<64xf32> to vector<64x1xf32>
    %34 = vector.broadcast %33 : vector<64x1xf32> to vector<64x8xf32>
    %35 = arith.divf %31, %34 : vector<64x8xf32>
    %c0_20 = arith.constant 0 : index
    %c0_21 = arith.constant 0 : index
    %36 = vector.load %arg8[%c0_20, %c0_21] : memref<64x8xf32, #tpu.memory_space<vmem>>, vector<64x8xf32>
    tpu.vector_store %arg8[%c0_20, %c0_21], %35 {strides = array<i32>} : memref<64x8xf32, #tpu.memory_space<vmem>>, vector<64x8xf32>,
    %cst_22 = arith.constant dense<0xFF800000> : vector<64xf32>
    %37 = vector.multi_reduction <maximumf>, %35, %cst_22 [1] : vector<64x8xf32> to vector<64xf32>
    %38 = vector.shape_cast %37 : vector<64xf32> to vector<64x1xf32>
    %39 = vector.broadcast %38 : vector<64x1xf32> to vector<64x8xf32>
    %40 = arith.subf %35, %39 : vector<64x8xf32>
    %41 = math.exp %40 : vector<64x8xf32>
    %cst_23 = arith.constant dense<0.000000e+00> : vector<64xf32>
    %42 = vector.multi_reduction <add>, %41, %cst_23 [1] : vector<64x8xf32> to vector<64xf32>
    %43 = vector.shape_cast %42 : vector<64xf32> to vector<64x1xf32>
    %44 = vector.broadcast %43 : vector<64x1xf32> to vector<64x8xf32>
    %45 = arith.divf %41, %44 : vector<64x8xf32>
    %cst_24 = arith.constant 1.000000e-10 : f32
    %46 = vector.broadcast %cst_24 : f32 to vector<64x8xf32>
    %47 = arith.addf %45, %46 : vector<64x8xf32>
    %48 = math.log %47 : vector<64x8xf32>
    %49 = arith.mulf %45, %48 : vector<64x8xf32>
    %50 = vector.shape_cast %49 : vector<64x8xf32> to vector<1x64x8xf32>
    %cst_25 = arith.constant dense<0.000000e+00> : vector<1xf32>
    %51 = vector.multi_reduction <add>, %50, %cst_25 [1, 2] : vector<1x64x8xf32> to vector<1xf32>
    %52 = vector.shape_cast %51 : vector<1xf32> to vector<1x1x1xf32>
    %53 = vector.extract %52[0, 0, 0] : f32 from vector<1x1x1xf32>
    %54 = vector.broadcast %53 : f32 to vector<1x1xf32>
    %cst_26 = arith.constant -1.562500e-02 : f32
    %55 = vector.broadcast %cst_26 : f32 to vector<1x1xf32>
    %56 = arith.mulf %55, %54 : vector<1x1xf32>
    %c0_27 = arith.constant 0 : index
    %c0_28 = arith.constant 0 : index
    %57 = vector.load %arg11[%c0_27, %c0_28] : memref<1x1xf32, #tpu.memory_space<vmem>>, vector<1x1xf32>
    tpu.vector_store %arg11[%c0_27, %c0_28], %56 {strides = array<i32>} : memref<1x1xf32, #tpu.memory_space<vmem>>, vector<1x1xf32>,
    %cst_29 = arith.constant dense<0.000000e+00> : vector<8x8xf32>
    %58 = tpu.matmul %35, %2, %cst_29 {dimension_numbers = #tpu.dot_dimension_numbers<[0], [0], [1], [1], [0, 1, 1, 1], [], []>} : vector<64x8xf32>, vector<64x8xf32>, vector<8x8xf32> -> vector<8x8xf32>
    %c0_30 = arith.constant 0 : index
    %c0_31 = arith.constant 0 : index
    %59 = vector.load %arg9[%c0_30, %c0_31] : memref<8x8xf32, #tpu.memory_space<vmem>>, vector<8x8xf32>
    tpu.vector_store %arg9[%c0_30, %c0_31], %58 {strides = array<i32>} : memref<8x8xf32, #tpu.memory_space<vmem>>, vector<8x8xf32>,
    %cst_32 = arith.constant dense<0.000000e+00> : vector<8x64xf32>
    %60 = tpu.matmul %35, %1, %cst_32 {dimension_numbers = #tpu.dot_dimension_numbers<[0], [0], [1], [1], [0, 1, 1, 1], [], []>} : vector<64x8xf32>, vector<64x64xf32>, vector<8x64xf32> -> vector<8x64xf32>
    %cst_33 = arith.constant dense<0.000000e+00> : vector<8x8xf32>
    %61 = tpu.matmul %60, %35, %cst_33 {dimension_numbers = #tpu.dot_dimension_numbers<[1], [0], [0], [1], [0, 0, 1, 1], [], []>} : vector<8x64xf32>, vector<64x8xf32>, vector<8x8xf32> -> vector<8x8xf32>
    %c0_34 = arith.constant 0 : index
    %c0_35 = arith.constant 0 : index
    %62 = vector.load %arg10[%c0_34, %c0_35] : memref<8x8xf32, #tpu.memory_space<vmem>>, vector<8x8xf32>
    tpu.vector_store %arg10[%c0_34, %c0_35], %61 {strides = array<i32>} : memref<8x8xf32, #tpu.memory_space<vmem>>, vector<8x8xf32>,
    %cst_36 = arith.constant dense<0.000000e+00> : vector<64x64xf32>
    %63 = tpu.matmul %35, %35, %cst_36 {dimension_numbers = #tpu.dot_dimension_numbers<[1], [1], [0], [0], [0, 0, 1, 0], [], []>} : vector<64x8xf32>, vector<64x8xf32>, vector<64x64xf32> -> vector<64x64xf32>
    %64 = arith.subf %63, %1 : vector<64x64xf32>
    %65 = arith.mulf %64, %64 : vector<64x64xf32>
    %66 = vector.shape_cast %65 : vector<64x64xf32> to vector<1x64x64xf32>
    %cst_37 = arith.constant dense<0.000000e+00> : vector<1xf32>
    %67 = vector.multi_reduction <add>, %66, %cst_37 [1, 2] : vector<1x64x64xf32> to vector<1xf32>
    %68 = vector.shape_cast %67 : vector<1xf32> to vector<1x1x1xf32>
    %69 = vector.extract %68[0, 0, 0] : f32 from vector<1x1x1xf32>
    %70 = vector.broadcast %69 : f32 to vector<1x1xf32>
    %71 = math.sqrt %70 : vector<1x1xf32>
    %c0_38 = arith.constant 0 : index
    %c0_39 = arith.constant 0 : index
    %72 = vector.load %arg12[%c0_38, %c0_39] : memref<1x1xf32, #tpu.memory_space<vmem>>, vector<1x1xf32>
    tpu.vector_store %arg12[%c0_38, %c0_39], %71 {strides = array<i32>} : memref<1x1xf32, #tpu.memory_space<vmem>>, vector<1x1xf32>,
    return
  }
  func.func @transform_0(%arg0: i32) -> (i32, i32) {
    %c0_i32 = arith.constant 0 : i32
    %c0_i32_0 = arith.constant 0 : i32
    %c0_i32_1 = arith.constant 0 : i32
    return %c0_i32, %c0_i32_0 : i32, i32
  }
  func.func @transform_1(%arg0: i32) -> (i32, i32) {
    %c0_i32 = arith.constant 0 : i32
    %c0_i32_0 = arith.constant 0 : i32
    %c0_i32_1 = arith.constant 0 : i32
    return %c0_i32, %c0_i32_0 : i32, i32
  }
  func.func @transform_2(%arg0: i32) -> (i32, i32) {
    %c0_i32 = arith.constant 0 : i32
    %c0_i32_0 = arith.constant 0 : i32
    %c0_i32_1 = arith.constant 0 : i32
    return %c0_i32, %c0_i32_0 : i32, i32
  }
  func.func @transform_3(%arg0: i32) -> (i32, i32) {
    %c0_i32 = arith.constant 0 : i32
    %c0_i32_0 = arith.constant 0 : i32
    %c0_i32_1 = arith.constant 0 : i32
    return %c0_i32, %c0_i32_0 : i32, i32
  }
  func.func @transform_4(%arg0: i32) -> (i32, i32) {
    %c0_i32 = arith.constant 0 : i32
    %c0_i32_0 = arith.constant 0 : i32
    %c0_i32_1 = arith.constant 0 : i32
    return %c0_i32, %c0_i32_0 : i32, i32
  }
  func.func @transform_5(%arg0: i32) -> (i32, i32) {
    %c0_i32 = arith.constant 0 : i32
    %c0_i32_0 = arith.constant 0 : i32
    %c0_i32_1 = arith.constant 0 : i32
    return %c0_i32, %c0_i32_0 : i32, i32
  }
  func.func @transform_6(%arg0: i32) -> (i32, i32) {
    %c0_i32 = arith.constant 0 : i32
    %c0_i32_0 = arith.constant 0 : i32
    %c0_i32_1 = arith.constant 0 : i32
    return %c0_i32, %c0_i32_0 : i32, i32
  }
  func.func @transform_7(%arg0: i32) -> (i32, i32) {
    %c0_i32 = arith.constant 0 : i32
    %c0_i32_0 = arith.constant 0 : i32
    %c0_i32_1 = arith.constant 0 : i32
    return %c0_i32, %c0_i32_0 : i32, i32
  }
  func.func @transform_8(%arg0: i32) -> (i32, i32) {
    %c0_i32 = arith.constant 0 : i32
    %c0_i32_0 = arith.constant 0 : i32
    %c0_i32_1 = arith.constant 0 : i32
    return %c0_i32, %c0_i32_0 : i32, i32
  }
  func.func @transform_9(%arg0: i32) -> (i32, i32) {
    %c0_i32 = arith.constant 0 : i32
    %c0_i32_0 = arith.constant 0 : i32
    %c0_i32_1 = arith.constant 0 : i32
    return %c0_i32, %c0_i32_0 : i32, i32
  }
  func.func @transform_10(%arg0: i32) -> (i32, i32) {
    %c0_i32 = arith.constant 0 : i32
    %c0_i32_0 = arith.constant 0 : i32
    %c0_i32_1 = arith.constant 0 : i32
    return %c0_i32, %c0_i32_0 : i32, i32
  }
  func.func @transform_11(%arg0: i32) -> (i32, i32) {
    %c0_i32 = arith.constant 0 : i32
    %c0_i32_0 = arith.constant 0 : i32
    %c0_i32_1 = arith.constant 0 : i32
    return %c0_i32, %c0_i32_0 : i32, i32
  }
}

</mosaic_0001>

<llo_original>
// kernel: tpu_custom_call.1
$region0: #{tpu_custom_call.1}
  #allocation0 [shape = 'u32[]', space=smem, size = 0x4, offset = 0x4, fixed_abs, tag = 'smem constant byte address 0x4 - core index']
  #allocation1 [shape = 'u32[144,128]{1,0:T(1,128)}', space=vmem, size = 0x12000, scoped, tag = 'internal scratch']
  %s0 = inlined_call_operand.vmem [shape: f32[64,8], index: 0, kind: input, shape index: {}]
  %s1 = inlined_call_operand.vmem [shape: bf16[64,64], index: 1, kind: input, shape index: {}]
  %s2 = inlined_call_operand.vmem [shape: f32[8,16], index: 2, kind: input, shape index: {}]
  %s3 = inlined_call_operand.vmem [shape: f32[1,16], index: 3, kind: input, shape index: {}]
  %s4 = inlined_call_operand.vmem [shape: f32[16,8], index: 4, kind: input, shape index: {}]
  %s5 = inlined_call_operand.vmem [shape: f32[1,8], index: 5, kind: input, shape index: {}]
  %s6 = inlined_call_operand.vmem [shape: f32[64,16], index: 6, kind: output, shape index: {0}]
  %s7 = inlined_call_operand.vmem [shape: f32[64,8], index: 7, kind: output, shape index: {1}]
  %s8 = inlined_call_operand.hbm [shape: f32[8,8], index: 8, kind: output, shape index: {2}]
  %s9 = inlined_call_operand.hbm [shape: f32[8,8], index: 9, kind: output, shape index: {3}]
  %s10 = inlined_call_operand.hbm [shape: f32[1,1], index: 10, kind: output, shape index: {4}]
  %s11 = inlined_call_operand.hbm [shape: f32[1,1], index: 11, kind: output, shape index: {5}]
  %12 = xla_tuple %s6, %s7, %s8, %s9, %s10, %s11
  %s13 = sld [smem:[#allocation0]]
  $region74: #{tpu_custom_call.1} parent=0
    _
  %s15 = ssub.s32 1, %s13
  %s16 = scalar_select 0, %s15, %s13
  $region1: #{tpu_custom_call.1} parent=0
    #allocation2 [shape = 'u8[4096]{0}', space=vmem, size = 0x1000, scoped, tag = 'output window, operand 2, single buffered']
    #allocation3 [shape = 's32[1]{0}', space=sflag, size = 0x4, scoped, tag = 'scoped memory for tpu_custom_call.1']
    #allocation4 [shape = 'u8[4096]{0}', space=vmem, size = 0x1000, scoped, tag = 'output window, operand 3, single buffered']
    #allocation5 [shape = 's32[1]{0}', space=sflag, size = 0x4, scoped, tag = 'scoped memory for tpu_custom_call.1']
    #allocation6 [shape = 'u8[512]{0}', space=vmem, size = 0x400, scoped, tag = 'output window, operand 4, single buffered']
    #allocation7 [shape = 'u8[512]{0}', space=vmem, size = 0x400, scoped, tag = 'output window, operand 5, single buffered']
    #allocation8 [shape = 's32[1]{0}', space=sflag, size = 0x4, scoped, tag = 'scoped memory for tpu_custom_call.1']
    %17 = vsyncpa [#allocation3], 0
    %18 = vsyncpa [#allocation5], 0
    %19 = vsyncpa [#allocation8], 0
    // Predicated region
    $region2: #{tpu_custom_call.1} parent=1 // pred_check
      _
    $region3: #{tpu_custom_call.1} parent=1 // pred_check_branch
      %21 = sbr.rel (0) target = $region5
    $region4: #{tpu_custom_call.1} parent=1 // pred_region
      _
    $region5: #{tpu_custom_call.1} parent=1 // pred_fallthru
      _
    // Predicated region
    $region6: #{tpu_custom_call.1} parent=1 // pred_check
      _
    $region7: #{tpu_custom_call.1} parent=1 // pred_check_branch
      %23 = sbr.rel (0) target = $region9
    $region8: #{tpu_custom_call.1} parent=1 // pred_region
      _
    $region9: #{tpu_custom_call.1} parent=1 // pred_fallthru
      _
    // Predicated region
    $region10: #{tpu_custom_call.1} parent=1 // pred_check
      _
    $region11: #{tpu_custom_call.1} parent=1 // pred_check_branch
      %25 = sbr.rel (0) target = $region13
    $region12: #{tpu_custom_call.1} parent=1 // pred_region
      _
    $region13: #{tpu_custom_call.1} parent=1 // pred_fallthru
      _
    // Predicated region
    $region14: #{tpu_custom_call.1} parent=1 // pred_check
      _
    $region15: #{tpu_custom_call.1} parent=1 // pred_check_branch
      %27 = sbr.rel (0) target = $region17
    $region16: #{tpu_custom_call.1} parent=1 // pred_region
      _
    $region17: #{tpu_custom_call.1} parent=1 // pred_fallthru
      _
    // Predicated region
    $region18: #{tpu_custom_call.1} parent=1 // pred_check
      _
    $region19: #{tpu_custom_call.1} parent=1 // pred_check_branch
      %29 = sbr.rel (0) target = $region21
    $region20: #{tpu_custom_call.1} parent=1 // pred_region
      _
    $region21: #{tpu_custom_call.1} parent=1 // pred_fallthru
      _
    // Predicated region
    $region22: #{tpu_custom_call.1} parent=1 // pred_check
      _
    $region23: #{tpu_custom_call.1} parent=1 // pred_check_branch
      %31 = sbr.rel (0) target = $region25
    $region24: #{tpu_custom_call.1} parent=1 // pred_region
      _
    $region25: #{tpu_custom_call.1} parent=1 // pred_fallthru
      _
    %v32 = vld [vmem:[%s1] sm:$0xf]
    %v33 = vld [vmem:[%s1 + $0x4] sm:$0xf]
    %v34 = vld [vmem:[%s1 + $0x8] sm:$0xf]
    %v35 = vld [vmem:[%s1 + $0xc] sm:$0xf]
    %v36 = vld [vmem:[%s1 + $0x10] sm:$0xf]
    %v37 = vld [vmem:[%s1 + $0x14] sm:$0xf]
    %v38 = vld [vmem:[%s1 + $0x18] sm:$0xf]
    %v39 = vld [vmem:[%s1 + $0x1c] sm:$0xf]
    %v40 = vunpack.c.l.bf16 %v32
    %v41 = vunpack.c.l.bf16 %v33
    %v42 = vunpack.c.l.bf16 %v34
    %v43 = vunpack.c.l.bf16 %v35
    %v44 = vunpack.c.l.bf16 %v36
    %v45 = vunpack.c.l.bf16 %v37
    %v46 = vunpack.c.l.bf16 %v38
    %v47 = vunpack.c.l.bf16 %v39
    %v48 = vld [vmem:[%s0] sm:$0xff]
    %v49 = vld [vmem:[%s0 + $0x8] sm:$0xff]
    %v50 = vld [vmem:[%s0 + $0x10] sm:$0xff]
    %v51 = vld [vmem:[%s0 + $0x18] sm:$0xff]
    %v52 = vld [vmem:[%s0 + $0x20] sm:$0xff]
    %v53 = vld [vmem:[%s0 + $0x28] sm:$0xff]
    %v54 = vld [vmem:[%s0 + $0x30] sm:$0xff]
    %v55 = vld [vmem:[%s0 + $0x38] sm:$0xff]
    %vm56 = vcmask 523264
    %v57 = vsel %vm56, %v40, 0.0
    %58 = vadd.xlane.f32.xlu0 %v57
    %v59 = vpop.xlane.xlu0 %58
    %v60 = vsel %vm56, %v41, 0.0
    %61 = vadd.xlane.f32.xlu0 %v60
    %v62 = vpop.xlane.xlu0 %61
    %v63 = vsel %vm56, %v42, 0.0
    %64 = vadd.xlane.f32.xlu0 %v63
    %v65 = vpop.xlane.xlu0 %64
    %v66 = vsel %vm56, %v43, 0.0
    %67 = vadd.xlane.f32.xlu0 %v66
    %v68 = vpop.xlane.xlu0 %67
    %v69 = vsel %vm56, %v44, 0.0
    %70 = vadd.xlane.f32.xlu0 %v69
    %v71 = vpop.xlane.xlu0 %70
    %v72 = vsel %vm56, %v45, 0.0
    %73 = vadd.xlane.f32.xlu0 %v72
    %v74 = vpop.xlane.xlu0 %73
    %v75 = vsel %vm56, %v46, 0.0
    %76 = vadd.xlane.f32.xlu0 %v75
    %v77 = vpop.xlane.xlu0 %76
    %v78 = vsel %vm56, %v47, 0.0
    %79 = vadd.xlane.f32.xlu0 %v78
    %v80 = vpop.xlane.xlu0 %79
    %v81 = vadd.f32 %v59, 1.0
    %v82 = vadd.f32 %v62, 1.0
    %v83 = vadd.f32 %v65, 1.0
    %v84 = vadd.f32 %v68, 1.0
    %v85 = vadd.f32 %v71, 1.0
    %v86 = vadd.f32 %v74, 1.0
    %v87 = vadd.f32 %v77, 1.0
    %v88 = vadd.f32 %v80, 1.0
    %v89 = vrsqrt.pop %v81
    %v90 = vrsqrt.pop %v82
    %v91 = vrsqrt.pop %v83
    %v92 = vrsqrt.pop %v84
    %v93 = vrsqrt.pop %v85
    %v94 = vrsqrt.pop %v86
    %v95 = vrsqrt.pop %v87
    %v96 = vrsqrt.pop %v88
    %v97 = vld [vmem:[%s2] sm:$0xff]
    %vm98 = vcmask 64512
    %v100 = vsel %vm98, %v48, 0
    %v103 = vsel %vm98, %v49, 0
    %v106 = vsel %vm98, %v50, 0
    %v109 = vsel %vm98, %v51, 0
    %v112 = vsel %vm98, %v52, 0
    %v115 = vsel %vm98, %v53, 0
    %v118 = vsel %vm98, %v54, 0
    %v121 = vsel %vm98, %v55, 0
    %123 = vmatprep.subr.mxu0 0.0
    %124 = vmatpush1.msra.mxu0 0.0
    %125 = vmatprep.subr.mxu0 0.0
    %126 = vmatpush1.msra.mxu0 0.0
    %127 = vmatprep.subr.mxu0 0.0
    %128 = vmatpush1.msra.mxu0 0.0
    %129 = vmatprep.subr.mxu0 0.0
    %130 = vmatpush1.msra.mxu0 0.0
    %131 = vmatprep.subr.mxu0 0.0
    %132 = vmatpush1.msra.mxu0 0.0
    %133 = vmatprep.subr.mxu0 0.0
    %134 = vmatpush1.msra.mxu0 0.0
    %135 = vmatprep.subr.mxu0 0.0
    %136 = vmatpush1.msra.mxu0 0.0
    %137 = vmatprep.subr.mxu0 0.0
    %138 = vmatpush1.msra.mxu0 0.0
    %139 = vmatprep.subr.mxu0 0.0
    %140 = vmatpush1.msra.mxu0 0.0
    %141 = vmatprep.subr.mxu0 0.0
    %142 = vmatpush1.msra.mxu0 0.0
    %143 = vmatprep.subr.mxu0 0.0
    %144 = vmatpush1.msra.mxu0 0.0
    %145 = vmatprep.subr.mxu0 0.0
    %146 = vmatpush1.msra.mxu0 0.0
    %147 = vmatprep.subr.mxu0 0.0
    %148 = vmatpush1.msra.mxu0 0.0
    %149 = vmatprep.subr.mxu0 0.0
    %150 = vmatpush1.msra.mxu0 0.0
    %151 = vmatprep.subr.mxu0 0.0
    %152 = vmatpush1.msra.mxu0 0.0
    %153 = vmatprep.subr.mxu0 0.0
    %154 = vmatpush1.msra.mxu0 %v97
    %155 = vmatprep.subr.mxu0 0.0
    %156 = vmatpush2.msra.mxu0 0.0
    %157 = vmatprep.subr.mxu0 0.0
    %158 = vmatpush2.msra.mxu0 0.0
    %159 = vmatprep.subr.mxu0 0.0
    %160 = vmatpush2.msra.mxu0 0.0
    %161 = vmatprep.subr.mxu0 0.0
    %162 = vmatpush2.msra.mxu0 0.0
    %163 = vmatprep.subr.mxu0 0.0
    %164 = vmatpush2.msra.mxu0 0.0
    %165 = vmatprep.subr.mxu0 0.0
    %166 = vmatpush2.msra.mxu0 0.0
    %167 = vmatprep.subr.mxu0 0.0
    %168 = vmatpush2.msra.mxu0 0.0
    %169 = vmatprep.subr.mxu0 0.0
    %170 = vmatpush2.msra.mxu0 0.0
    %171 = vmatprep.subr.mxu0 0.0
    %172 = vmatpush2.msra.mxu0 0.0
    %173 = vmatprep.subr.mxu0 0.0
    %174 = vmatpush2.msra.mxu0 0.0
    %175 = vmatprep.subr.mxu0 0.0
    %176 = vmatpush2.msra.mxu0 0.0
    %177 = vmatprep.subr.mxu0 0.0
    %178 = vmatpush2.msra.mxu0 0.0
    %179 = vmatprep.subr.mxu0 0.0
    %180 = vmatpush2.msra.mxu0 0.0
    %181 = vmatprep.subr.mxu0 0.0
    %182 = vmatpush2.msra.mxu0 0.0
    %183 = vmatprep.subr.mxu0 0.0
    %184 = vmatpush2.msra.mxu0 0.0
    %185 = vmatprep.subr.mxu0 0.0
    %186 = vmatpush2.msra.mxu0 0.0
    %187 = vmatprep.mubr.f32.mxu0 0.0
    %188 = vmatmul.mubr.f32.gmra.mxu0 %v100
    %v189 = vpop.f32.mrf.mxu0
    %v190 = vadd.f32 0.0, %v189
    %v191 = vpop.f32.mrf.mxu0
    %192 = vmatprep.mubr.f32.mxu0 0.0
    %193 = vmatmul.mubr.f32.gmra.mxu0 %v103
    %v194 = vpop.f32.mrf.mxu0
    %v195 = vadd.f32 0.0, %v194
    %v196 = vpop.f32.mrf.mxu0
    %197 = vmatprep.mubr.f32.mxu0 0.0
    %198 = vmatmul.mubr.f32.gmra.mxu0 %v106
    %v199 = vpop.f32.mrf.mxu0
    %v200 = vadd.f32 0.0, %v199
    %v201 = vpop.f32.mrf.mxu0
    %202 = vmatprep.mubr.f32.mxu0 0.0
    %203 = vmatmul.mubr.f32.gmra.mxu0 %v109
    %v204 = vpop.f32.mrf.mxu0
    %v205 = vadd.f32 0.0, %v204
    %v206 = vpop.f32.mrf.mxu0
    %207 = vmatprep.mubr.f32.mxu0 0.0
    %208 = vmatmul.mubr.f32.gmra.mxu0 %v112
    %v209 = vpop.f32.mrf.mxu0
    %v210 = vadd.f32 0.0, %v209
    %v211 = vpop.f32.mrf.mxu0
    %212 = vmatprep.mubr.f32.mxu0 0.0
    %213 = vmatmul.mubr.f32.gmra.mxu0 %v115
    %v214 = vpop.f32.mrf.mxu0
    %v215 = vadd.f32 0.0, %v214
    %v216 = vpop.f32.mrf.mxu0
    %217 = vmatprep.mubr.f32.mxu0 0.0
    %218 = vmatmul.mubr.f32.gmra.mxu0 %v118
    %v219 = vpop.f32.mrf.mxu0
    %v220 = vadd.f32 0.0, %v219
    %v221 = vpop.f32.mrf.mxu0
    %222 = vmatprep.mubr.f32.mxu0 0.0
    %223 = vmatmul.mubr.f32.gmra.mxu0 %v121
    %v224 = vpop.f32.mrf.mxu0
    %v225 = vadd.f32 0.0, %v224
    %v226 = vpop.f32.mrf.mxu0
    %227 = vdwg.mxu0
    %v228 = vmul.f32 %v89, %v190
    %v229 = vmul.f32 %v90, %v195
    %v230 = vmul.f32 %v91, %v200
    %v231 = vmul.f32 %v92, %v205
    %v232 = vmul.f32 %v93, %v210
    %v233 = vmul.f32 %v94, %v215
    %v234 = vmul.f32 %v95, %v220
    %v235 = vmul.f32 %v96, %v225
    %v237 = vsel %vm56, %v40, 0
    %v240 = vsel %vm56, %v41, 0
    %v243 = vsel %vm56, %v42, 0
    %v246 = vsel %vm56, %v43, 0
    %v249 = vsel %vm56, %v44, 0
    %v252 = vsel %vm56, %v45, 0
    %v255 = vsel %vm56, %v46, 0
    %v258 = vsel %vm56, %v47, 0
    %260 = vmatprep.subr.mxu0 0.0
    %261 = vmatpush1.msra.mxu0 0.0
    %262 = vmatprep.subr.mxu0 0.0
    %263 = vmatpush1.msra.mxu0 0.0
    %264 = vmatprep.subr.mxu0 0.0
    %265 = vmatpush1.msra.mxu0 0.0
    %266 = vmatprep.subr.mxu0 0.0
    %267 = vmatpush1.msra.mxu0 0.0
    %268 = vmatprep.subr.mxu0 0.0
    %269 = vmatpush1.msra.mxu0 0.0
    %270 = vmatprep.subr.mxu0 0.0
    %271 = vmatpush1.msra.mxu0 0.0
    %272 = vmatprep.subr.mxu0 0.0
    %273 = vmatpush1.msra.mxu0 0.0
    %274 = vmatprep.subr.mxu0 0.0
    %275 = vmatpush1.msra.mxu0 0.0
    %276 = vmatprep.subr.mxu0 0.0
    %277 = vmatpush1.msra.mxu0 %v235
    %278 = vmatprep.subr.mxu0 0.0
    %279 = vmatpush1.msra.mxu0 %v234
    %280 = vmatprep.subr.mxu0 0.0
    %281 = vmatpush1.msra.mxu0 %v233
    %282 = vmatprep.subr.mxu0 0.0
    %283 = vmatpush1.msra.mxu0 %v232
    %284 = vmatprep.subr.mxu0 0.0
    %285 = vmatpush1.msra.mxu0 %v231
    %286 = vmatprep.subr.mxu0 0.0
    %287 = vmatpush1.msra.mxu0 %v230
    %288 = vmatprep.subr.mxu0 0.0
    %289 = vmatpush1.msra.mxu0 %v229
    %290 = vmatprep.subr.mxu0 0.0
    %291 = vmatpush1.msra.mxu0 %v228
    %292 = vmatprep.subr.mxu0 0.0
    %293 = vmatpush2.msra.mxu0 0.0
    %294 = vmatprep.subr.mxu0 0.0
    %295 = vmatpush2.msra.mxu0 0.0
    %296 = vmatprep.subr.mxu0 0.0
    %297 = vmatpush2.msra.mxu0 0.0
    %298 = vmatprep.subr.mxu0 0.0
    %299 = vmatpush2.msra.mxu0 0.0
    %300 = vmatprep.subr.mxu0 0.0
    %301 = vmatpush2.msra.mxu0 0.0
    %302 = vmatprep.subr.mxu0 0.0
    %303 = vmatpush2.msra.mxu0 0.0
    %304 = vmatprep.subr.mxu0 0.0
    %305 = vmatpush2.msra.mxu0 0.0
    %306 = vmatprep.subr.mxu0 0.0
    %307 = vmatpush2.msra.mxu0 0.0
    %308 = vmatprep.subr.mxu0 0.0
    %309 = vmatpush2.msra.mxu0 0.0
    %310 = vmatprep.subr.mxu0 0.0
    %311 = vmatpush2.msra.mxu0 0.0
    %312 = vmatprep.subr.mxu0 0.0
    %313 = vmatpush2.msra.mxu0 0.0
    %314 = vmatprep.subr.mxu0 0.0
    %315 = vmatpush2.msra.mxu0 0.0
    %316 = vmatprep.subr.mxu0 0.0
    %317 = vmatpush2.msra.mxu0 0.0
    %318 = vmatprep.subr.mxu0 0.0
    %319 = vmatpush2.msra.mxu0 0.0
    %320 = vmatprep.subr.mxu0 0.0
    %321 = vmatpush2.msra.mxu0 0.0
    %322 = vmatprep.subr.mxu0 0.0
    %323 = vmatpush2.msra.mxu0 0.0
    %324 = vmatprep.mubr.f32.mxu0 0.0
    %325 = vmatmul.mubr.f32.gmra.mxu0 %v237
    %v326 = vpop.f32.mrf.mxu0
    %v327 = vadd.f32 %v228, %v326
    %v328 = vpop.f32.mrf.mxu0
    %329 = vmatprep.mubr.f32.mxu0 0.0
    %330 = vmatmul.mubr.f32.gmra.mxu0 %v240
    %v331 = vpop.f32.mrf.mxu0
    %v332 = vadd.f32 %v229, %v331
    %v333 = vpop.f32.mrf.mxu0
    %334 = vmatprep.mubr.f32.mxu0 0.0
    %335 = vmatmul.mubr.f32.gmra.mxu0 %v243
    %v336 = vpop.f32.mrf.mxu0
    %v337 = vadd.f32 %v230, %v336
    %v338 = vpop.f32.mrf.mxu0
    %339 = vmatprep.mubr.f32.mxu0 0.0
    %340 = vmatmul.mubr.f32.gmra.mxu0 %v246
    %v341 = vpop.f32.mrf.mxu0
    %v342 = vadd.f32 %v231, %v341
    %v343 = vpop.f32.mrf.mxu0
    %344 = vmatprep.mubr.f32.mxu0 0.0
    %345 = vmatmul.mubr.f32.gmra.mxu0 %v249
    %v346 = vpop.f32.mrf.mxu0
    %v347 = vadd.f32 %v232, %v346
    %v348 = vpop.f32.mrf.mxu0
    %349 = vmatprep.mubr.f32.mxu0 0.0
    %350 = vmatmul.mubr.f32.gmra.mxu0 %v252
    %v351 = vpop.f32.mrf.mxu0
    %v352 = vadd.f32 %v233, %v351
    %v353 = vpop.f32.mrf.mxu0
    %354 = vmatprep.mubr.f32.mxu0 0.0
    %355 = vmatmul.mubr.f32.gmra.mxu0 %v255
    %v356 = vpop.f32.mrf.mxu0
    %v357 = vadd.f32 %v234, %v356
    %v358 = vpop.f32.mrf.mxu0
    %359 = vmatprep.mubr.f32.mxu0 0.0
    %360 = vmatmul.mubr.f32.gmra.mxu0 %v258
    %v361 = vpop.f32.mrf.mxu0
    %v362 = vadd.f32 %v235, %v361
    %v363 = vpop.f32.mrf.mxu0
    %364 = vdwg.mxu0
    %v365 = vmul.f32 %v89, %v327
    %v366 = vmul.f32 %v90, %v332
    %v367 = vmul.f32 %v91, %v337
    %v368 = vmul.f32 %v92, %v342
    %v369 = vmul.f32 %v93, %v347
    %v370 = vmul.f32 %v94, %v352
    %v371 = vmul.f32 %v95, %v357
    %v372 = vmul.f32 %v96, %v362
    %v373 = vld [vmem:[%s3] sm:$0x1]
    %v375 = vlaneseq
    %v376 = vshrl.u32 %v375, 7
    %v377 = vsub.s32 0, %v376
    %v378 = vrot.slane %v373, %v377
    %v380 = vadd.f32 %v365, %v378
    %v381 = vadd.f32 %v366, %v378
    %v382 = vadd.f32 %v367, %v378
    %v383 = vadd.f32 %v368, %v378
    %v384 = vadd.f32 %v369, %v378
    %v385 = vadd.f32 %v370, %v378
    %v386 = vadd.f32 %v371, %v378
    %v387 = vadd.f32 %v372, %v378
    %v388 = vmax.f32 %v380, 0.0
    %v389 = vmax.f32 %v381, 0.0
    %v390 = vmax.f32 %v382, 0.0
    %v391 = vmax.f32 %v383, 0.0
    %v392 = vmax.f32 %v384, 0.0
    %v393 = vmax.f32 %v385, 0.0
    %v394 = vmax.f32 %v386, 0.0
    %v395 = vmax.f32 %v387, 0.0
    %vm396 = vcmask 130048
    %397 = vst.msk [vmem:[%s6] sm:$0xff] %vm396, %v388
    %398 = vst.msk [vmem:[%s6 + $0x8] sm:$0xff] %vm396, %v389
    %399 = vst.msk [vmem:[%s6 + $0x10] sm:$0xff] %vm396, %v390
    %400 = vst.msk [vmem:[%s6 + $0x18] sm:$0xff] %vm396, %v391
    %401 = vst.msk [vmem:[%s6 + $0x20] sm:$0xff] %vm396, %v392
    %402 = vst.msk [vmem:[%s6 + $0x28] sm:$0xff] %vm396, %v393
    %403 = vst.msk [vmem:[%s6 + $0x30] sm:$0xff] %vm396, %v394
    %404 = vst.msk [vmem:[%s6 + $0x38] sm:$0xff] %vm396, %v395
    %v405 = vld [vmem:[%s4] sm:$0xff]
    %v406 = vld [vmem:[%s4 + $0x8] sm:$0xff]
    %v407 = vld [vmem:[%s5] sm:$0x1]
    %v409 = vlaneseq
    %v410 = vshrl.u32 %v409, 7
    %v411 = vsub.s32 0, %v410
    %v412 = vrot.slane %v407, %v411
    %v415 = vsel %vm396, %v388, 0
    %v418 = vsel %vm396, %v389, 0
    %v421 = vsel %vm396, %v390, 0
    %v424 = vsel %vm396, %v391, 0
    %v427 = vsel %vm396, %v392, 0
    %v430 = vsel %vm396, %v393, 0
    %v433 = vsel %vm396, %v394, 0
    %v436 = vsel %vm396, %v395, 0
    %438 = vmatprep.subr.mxu0 0.0
    %439 = vmatpush1.msra.mxu0 0.0
    %440 = vmatprep.subr.mxu0 0.0
    %441 = vmatpush1.msra.mxu0 0.0
    %442 = vmatprep.subr.mxu0 0.0
    %443 = vmatpush1.msra.mxu0 0.0
    %444 = vmatprep.subr.mxu0 0.0
    %445 = vmatpush1.msra.mxu0 0.0
    %446 = vmatprep.subr.mxu0 0.0
    %447 = vmatpush1.msra.mxu0 0.0
    %448 = vmatprep.subr.mxu0 0.0
    %449 = vmatpush1.msra.mxu0 0.0
    %450 = vmatprep.subr.mxu0 0.0
    %451 = vmatpush1.msra.mxu0 0.0
    %452 = vmatprep.subr.mxu0 0.0
    %453 = vmatpush1.msra.mxu0 0.0
    %454 = vmatprep.subr.mxu0 0.0
    %455 = vmatpush1.msra.mxu0 0.0
    %456 = vmatprep.subr.mxu0 0.0
    %457 = vmatpush1.msra.mxu0 0.0
    %458 = vmatprep.subr.mxu0 0.0
    %459 = vmatpush1.msra.mxu0 0.0
    %460 = vmatprep.subr.mxu0 0.0
    %461 = vmatpush1.msra.mxu0 0.0
    %462 = vmatprep.subr.mxu0 0.0
    %463 = vmatpush1.msra.mxu0 0.0
    %464 = vmatprep.subr.mxu0 0.0
    %465 = vmatpush1.msra.mxu0 0.0
    %466 = vmatprep.subr.mxu0 0.0
    %467 = vmatpush1.msra.mxu0 %v406
    %468 = vmatprep.subr.mxu0 0.0
    %469 = vmatpush1.msra.mxu0 %v405
    %470 = vmatprep.subr.mxu0 0.0
    %471 = vmatpush2.msra.mxu0 0.0
    %472 = vmatprep.subr.mxu0 0.0
    %473 = vmatpush2.msra.mxu0 0.0
    %474 = vmatprep.subr.mxu0 0.0
    %475 = vmatpush2.msra.mxu0 0.0
    %476 = vmatprep.subr.mxu0 0.0
    %477 = vmatpush2.msra.mxu0 0.0
    %478 = vmatprep.subr.mxu0 0.0
    %479 = vmatpush2.msra.mxu0 0.0
    %480 = vmatprep.subr.mxu0 0.0
    %481 = vmatpush2.msra.mxu0 0.0
    %482 = vmatprep.subr.mxu0 0.0
    %483 = vmatpush2.msra.mxu0 0.0
    %484 = vmatprep.subr.mxu0 0.0
    %485 = vmatpush2.msra.mxu0 0.0
    %486 = vmatprep.subr.mxu0 0.0
    %487 = vmatpush2.msra.mxu0 0.0
    %488 = vmatprep.subr.mxu0 0.0
    %489 = vmatpush2.msra.mxu0 0.0
    %490 = vmatprep.subr.mxu0 0.0
    %491 = vmatpush2.msra.mxu0 0.0
    %492 = vmatprep.subr.mxu0 0.0
    %493 = vmatpush2.msra.mxu0 0.0
    %494 = vmatprep.subr.mxu0 0.0
    %495 = vmatpush2.msra.mxu0 0.0
    %496 = vmatprep.subr.mxu0 0.0
    %497 = vmatpush2.msra.mxu0 0.0
    %498 = vmatprep.subr.mxu0 0.0
    %499 = vmatpush2.msra.mxu0 0.0
    %500 = vmatprep.subr.mxu0 0.0
    %501 = vmatpush2.msra.mxu0 0.0
    %502 = vmatprep.mubr.f32.mxu0 0.0
    %503 = vmatmul.mubr.f32.gmra.mxu0 %v415
    %v504 = vpop.f32.mrf.mxu0
    %v505 = vadd.f32 %v412, %v504
    %v506 = vpop.f32.mrf.mxu0
    %507 = vmatprep.mubr.f32.mxu0 0.0
    %508 = vmatmul.mubr.f32.gmra.mxu0 %v418
    %v509 = vpop.f32.mrf.mxu0
    %v510 = vadd.f32 %v412, %v509
    %v511 = vpop.f32.mrf.mxu0
    %512 = vmatprep.mubr.f32.mxu0 0.0
    %513 = vmatmul.mubr.f32.gmra.mxu0 %v421
    %v514 = vpop.f32.mrf.mxu0
    %v515 = vadd.f32 %v412, %v514
    %v516 = vpop.f32.mrf.mxu0
    %517 = vmatprep.mubr.f32.mxu0 0.0
    %518 = vmatmul.mubr.f32.gmra.mxu0 %v424
    %v519 = vpop.f32.mrf.mxu0
    %v520 = vadd.f32 %v412, %v519
    %v521 = vpop.f32.mrf.mxu0
    %522 = vmatprep.mubr.f32.mxu0 0.0
    %523 = vmatmul.mubr.f32.gmra.mxu0 %v427
    %v524 = vpop.f32.mrf.mxu0
    %v525 = vadd.f32 %v412, %v524
    %v526 = vpop.f32.mrf.mxu0
    %527 = vmatprep.mubr.f32.mxu0 0.0
    %528 = vmatmul.mubr.f32.gmra.mxu0 %v430
    %v529 = vpop.f32.mrf.mxu0
    %v530 = vadd.f32 %v412, %v529
    %v531 = vpop.f32.mrf.mxu0
    %532 = vmatprep.mubr.f32.mxu0 0.0
    %533 = vmatmul.mubr.f32.gmra.mxu0 %v433
    %v534 = vpop.f32.mrf.mxu0
    %v535 = vadd.f32 %v412, %v534
    %v536 = vpop.f32.mrf.mxu0
    %537 = vmatprep.mubr.f32.mxu0 0.0
    %538 = vmatmul.mubr.f32.gmra.mxu0 %v436
    %v539 = vpop.f32.mrf.mxu0
    %v540 = vadd.f32 %v412, %v539
    %v541 = vpop.f32.mrf.mxu0
    %542 = vdwg.mxu0
    %v543 = vsel %vm98, %v505, -inf
    %544 = vmax.xlane.f32.xlu0 %v543
    %v545 = vpop.xlane.xlu0 %544
    %v546 = vsel %vm98, %v510, -inf
    %547 = vmax.xlane.f32.xlu0 %v546
    %v548 = vpop.xlane.xlu0 %547
    %v549 = vsel %vm98, %v515, -inf
    %550 = vmax.xlane.f32.xlu0 %v549
    %v551 = vpop.xlane.xlu0 %550
    %v552 = vsel %vm98, %v520, -inf
    %553 = vmax.xlane.f32.xlu0 %v552
    %v554 = vpop.xlane.xlu0 %553
    %v555 = vsel %vm98, %v525, -inf
    %556 = vmax.xlane.f32.xlu0 %v555
    %v557 = vpop.xlane.xlu0 %556
    %v558 = vsel %vm98, %v530, -inf
    %559 = vmax.xlane.f32.xlu0 %v558
    %v560 = vpop.xlane.xlu0 %559
    %v561 = vsel %vm98, %v535, -inf
    %562 = vmax.xlane.f32.xlu0 %v561
    %v563 = vpop.xlane.xlu0 %562
    %v564 = vsel %vm98, %v540, -inf
    %565 = vmax.xlane.f32.xlu0 %v564
    %v566 = vpop.xlane.xlu0 %565
    %v567 = vsub.f32 %v505, %v545
    %v568 = vsub.f32 %v510, %v548
    %v569 = vsub.f32 %v515, %v551
    %v570 = vsub.f32 %v520, %v554
    %v571 = vsub.f32 %v525, %v557
    %v572 = vsub.f32 %v530, %v560
    %v573 = vsub.f32 %v535, %v563
    %v574 = vsub.f32 %v540, %v566
    %v575 = vmul.f32 %v567, 1.442695
    %v576 = vpow.pop %v575
    %v577 = vmul.f32 %v568, 1.442695
    %v578 = vpow.pop %v577
    %v579 = vmul.f32 %v569, 1.442695
    %v580 = vpow.pop %v579
    %v581 = vmul.f32 %v570, 1.442695
    %v582 = vpow.pop %v581
    %v583 = vmul.f32 %v571, 1.442695
    %v584 = vpow.pop %v583
    %v585 = vmul.f32 %v572, 1.442695
    %v586 = vpow.pop %v585
    %v587 = vmul.f32 %v573, 1.442695
    %v588 = vpow.pop %v587
    %v589 = vmul.f32 %v574, 1.442695
    %v590 = vpow.pop %v589
    %v591 = vsel %vm98, %v576, 0.0
    %592 = vadd.xlane.f32.xlu0 %v591
    %v593 = vpop.xlane.xlu0 %592
    %v594 = vsel %vm98, %v578, 0.0
    %595 = vadd.xlane.f32.xlu0 %v594
    %v596 = vpop.xlane.xlu0 %595
    %v597 = vsel %vm98, %v580, 0.0
    %598 = vadd.xlane.f32.xlu0 %v597
    %v599 = vpop.xlane.xlu0 %598
    %v600 = vsel %vm98, %v582, 0.0
    %601 = vadd.xlane.f32.xlu0 %v600
    %v602 = vpop.xlane.xlu0 %601
    %v603 = vsel %vm98, %v584, 0.0
    %604 = vadd.xlane.f32.xlu0 %v603
    %v605 = vpop.xlane.xlu0 %604
    %v606 = vsel %vm98, %v586, 0.0
    %607 = vadd.xlane.f32.xlu0 %v606
    %v608 = vpop.xlane.xlu0 %607
    %v609 = vsel %vm98, %v588, 0.0
    %610 = vadd.xlane.f32.xlu0 %v609
    %v611 = vpop.xlane.xlu0 %610
    %v612 = vsel %vm98, %v590, 0.0
    %613 = vadd.xlane.f32.xlu0 %v612
    %v614 = vpop.xlane.xlu0 %613
    %v615 = vrcp.pop %v593
    %v616 = vmul.f32 %v576, %v615
    %v617 = vrcp.pop %v596
    %v618 = vmul.f32 %v578, %v617
    %v619 = vrcp.pop %v599
    %v620 = vmul.f32 %v580, %v619
    %v621 = vrcp.pop %v602
    %v622 = vmul.f32 %v582, %v621
    %v623 = vrcp.pop %v605
    %v624 = vmul.f32 %v584, %v623
    %v625 = vrcp.pop %v608
    %v626 = vmul.f32 %v586, %v625
    %v627 = vrcp.pop %v611
    %v628 = vmul.f32 %v588, %v627
    %v629 = vrcp.pop %v614
    %v630 = vmul.f32 %v590, %v629
    %631 = vst.msk [vmem:[%s7] sm:$0xff] %vm98, %v616
    %632 = vst.msk [vmem:[%s7 + $0x8] sm:$0xff] %vm98, %v618
    %633 = vst.msk [vmem:[%s7 + $0x10] sm:$0xff] %vm98, %v620
    %634 = vst.msk [vmem:[%s7 + $0x18] sm:$0xff] %vm98, %v622
    %635 = vst.msk [vmem:[%s7 + $0x20] sm:$0xff] %vm98, %v624
    %636 = vst.msk [vmem:[%s7 + $0x28] sm:$0xff] %vm98, %v626
    %637 = vst.msk [vmem:[%s7 + $0x30] sm:$0xff] %vm98, %v628
    %638 = vst.msk [vmem:[%s7 + $0x38] sm:$0xff] %vm98, %v630
    %v639 = vsel %vm98, %v616, -inf
    %640 = vmax.xlane.f32.xlu0 %v639
    %v641 = vpop.xlane.xlu0 %640
    %v642 = vsel %vm98, %v618, -inf
    %643 = vmax.xlane.f32.xlu0 %v642
    %v644 = vpop.xlane.xlu0 %643
    %v645 = vsel %vm98, %v620, -inf
    %646 = vmax.xlane.f32.xlu0 %v645
    %v647 = vpop.xlane.xlu0 %646
    %v648 = vsel %vm98, %v622, -inf
    %649 = vmax.xlane.f32.xlu0 %v648
    %v650 = vpop.xlane.xlu0 %649
    %v651 = vsel %vm98, %v624, -inf
    %652 = vmax.xlane.f32.xlu0 %v651
    %v653 = vpop.xlane.xlu0 %652
    %v654 = vsel %vm98, %v626, -inf
    %655 = vmax.xlane.f32.xlu0 %v654
    %v656 = vpop.xlane.xlu0 %655
    %v657 = vsel %vm98, %v628, -inf
    %658 = vmax.xlane.f32.xlu0 %v657
    %v659 = vpop.xlane.xlu0 %658
    %v660 = vsel %vm98, %v630, -inf
    %661 = vmax.xlane.f32.xlu0 %v660
    %v662 = vpop.xlane.xlu0 %661
    %v663 = vsub.f32 %v616, %v641
    %v664 = vsub.f32 %v618, %v644
    %v665 = vsub.f32 %v620, %v647
    %v666 = vsub.f32 %v622, %v650
    %v667 = vsub.f32 %v624, %v653
    %v668 = vsub.f32 %v626, %v656
    %v669 = vsub.f32 %v628, %v659
    %v670 = vsub.f32 %v630, %v662
    %v671 = vmul.f32 %v663, 1.442695
    %v672 = vpow.pop %v671
    %v673 = vmul.f32 %v664, 1.442695
    %v674 = vpow.pop %v673
    %v675 = vmul.f32 %v665, 1.442695
    %v676 = vpow.pop %v675
    %v677 = vmul.f32 %v666, 1.442695
    %v678 = vpow.pop %v677
    %v679 = vmul.f32 %v667, 1.442695
    %v680 = vpow.pop %v679
    %v681 = vmul.f32 %v668, 1.442695
    %v682 = vpow.pop %v681
    %v683 = vmul.f32 %v669, 1.442695
    %v684 = vpow.pop %v683
    %v685 = vmul.f32 %v670, 1.442695
    %v686 = vpow.pop %v685
    %v687 = vsel %vm98, %v672, 0.0
    %688 = vadd.xlane.f32.xlu0 %v687
    %v689 = vpop.xlane.xlu0 %688
    %v690 = vsel %vm98, %v674, 0.0
    %691 = vadd.xlane.f32.xlu0 %v690
    %v692 = vpop.xlane.xlu0 %691
    %v693 = vsel %vm98, %v676, 0.0
    %694 = vadd.xlane.f32.xlu0 %v693
    %v695 = vpop.xlane.xlu0 %694
    %v696 = vsel %vm98, %v678, 0.0
    %697 = vadd.xlane.f32.xlu0 %v696
    %v698 = vpop.xlane.xlu0 %697
    %v699 = vsel %vm98, %v680, 0.0
    %700 = vadd.xlane.f32.xlu0 %v699
    %v701 = vpop.xlane.xlu0 %700
    %v702 = vsel %vm98, %v682, 0.0
    %703 = vadd.xlane.f32.xlu0 %v702
    %v704 = vpop.xlane.xlu0 %703
    %v705 = vsel %vm98, %v684, 0.0
    %706 = vadd.xlane.f32.xlu0 %v705
    %v707 = vpop.xlane.xlu0 %706
    %v708 = vsel %vm98, %v686, 0.0
    %709 = vadd.xlane.f32.xlu0 %v708
    %v710 = vpop.xlane.xlu0 %709
    %v711 = vrcp.pop %v689
    %v712 = vmul.f32 %v672, %v711
    %v713 = vrcp.pop %v692
    %v714 = vmul.f32 %v674, %v713
    %v715 = vrcp.pop %v695
    %v716 = vmul.f32 %v676, %v715
    %v717 = vrcp.pop %v698
    %v718 = vmul.f32 %v678, %v717
    %v719 = vrcp.pop %v701
    %v720 = vmul.f32 %v680, %v719
    %v721 = vrcp.pop %v704
    %v722 = vmul.f32 %v682, %v721
    %v723 = vrcp.pop %v707
    %v724 = vmul.f32 %v684, %v723
    %v725 = vrcp.pop %v710
    %v726 = vmul.f32 %v686, %v725
    %v727 = vadd.f32 %v712, 1e-10
    %v728 = vadd.f32 %v714, 1e-10
    %v729 = vadd.f32 %v716, 1e-10
    %v730 = vadd.f32 %v718, 1e-10
    %v731 = vadd.f32 %v720, 1e-10
    %v732 = vadd.f32 %v722, 1e-10
    %v733 = vadd.f32 %v724, 1e-10
    %v734 = vadd.f32 %v726, 1e-10
    %v735 = vlog2.pop %v727
    %v736 = vmul.f32 %v735, 0.6931472
    %v737 = vlog2.pop %v728
    %v738 = vmul.f32 %v737, 0.6931472
    %v739 = vlog2.pop %v729
    %v740 = vmul.f32 %v739, 0.6931472
    %v741 = vlog2.pop %v730
    %v742 = vmul.f32 %v741, 0.6931472
    %v743 = vlog2.pop %v731
    %v744 = vmul.f32 %v743, 0.6931472
    %v745 = vlog2.pop %v732
    %v746 = vmul.f32 %v745, 0.6931472
    %v747 = vlog2.pop %v733
    %v748 = vmul.f32 %v747, 0.6931472
    %v749 = vlog2.pop %v734
    %v750 = vmul.f32 %v749, 0.6931472
    %v751 = vmul.f32 %v712, %v736
    %v752 = vmul.f32 %v714, %v738
    %v753 = vmul.f32 %v716, %v740
    %v754 = vmul.f32 %v718, %v742
    %v755 = vmul.f32 %v720, %v744
    %v756 = vmul.f32 %v722, %v746
    %v757 = vmul.f32 %v724, %v748
    %v758 = vmul.f32 %v726, %v750
    %v759 = vsel %vm98, %v751, 0.0
    %v760 = vsel %vm98, %v752, 0.0
    %v761 = vadd.f32 %v759, %v760
    %v762 = vsel %vm98, %v753, 0.0
    %v763 = vadd.f32 %v761, %v762
    %v764 = vsel %vm98, %v754, 0.0
    %v765 = vadd.f32 %v763, %v764
    %v766 = vsel %vm98, %v755, 0.0
    %v767 = vadd.f32 %v765, %v766
    %v768 = vsel %vm98, %v756, 0.0
    %v769 = vadd.f32 %v767, %v768
    %v770 = vsel %vm98, %v757, 0.0
    %v771 = vadd.f32 %v769, %v770
    %v772 = vsel %vm98, %v758, 0.0
    %v773 = vadd.f32 %v771, %v772
    %774 = vadd.xlane.f32.xlu0 %v773
    %v775 = vpop.xlane.xlu0 %774
    %v776 = vrot.slane %v775, 4
    %v777 = vadd.f32 %v775, %v776
    %v778 = vrot.slane %v777, 2
    %v779 = vadd.f32 %v777, %v778
    %v780 = vrot.slane %v779, 1
    %v781 = vadd.f32 %v779, %v780
    %s782 = vtos %v781
    %v783 = vstv %s782
    %v784 = vmul.f32 %v783, -0.015625
    %vm785 = vcmask 0
    %786 = vst.msk [vmem:[#allocation6] sm:$0x1] %vm785, %v784
    %787 = vxpose.xlu0.b32.start [1/16] %v616, 128
    %788 = vxpose.xlu0.b32.cont [2/16] %v618, 128
    %789 = vxpose.xlu0.b32.cont [3/16] %v620, 128
    %790 = vxpose.xlu0.b32.cont [4/16] %v622, 128
    %791 = vxpose.xlu0.b32.cont [5/16] %v624, 128
    %792 = vxpose.xlu0.b32.cont [6/16] %v626, 128
    %793 = vxpose.xlu0.b32.cont [7/16] %v628, 128
    %794 = vxpose.xlu0.b32.cont [8/16] %v630, 128
    %795 = vxpose.xlu0.b32.cont [9/16] 0.0, 128
    %796 = vxpose.xlu0.b32.cont [10/16] 0.0, 128
    %797 = vxpose.xlu0.b32.cont [11/16] 0.0, 128
    %798 = vxpose.xlu0.b32.cont [12/16] 0.0, 128
    %799 = vxpose.xlu0.b32.cont [13/16] 0.0, 128
    %800 = vxpose.xlu0.b32.cont [14/16] 0.0, 128
    %801 = vxpose.xlu0.b32.cont [15/16] 0.0, 128
    %802 = vxpose.xlu0.b32.end [16/16] 0.0, 128
    %v803 = vpop.trf.xlu0
    %v804 = vpop.trf.xlu0
    %v805 = vpop.trf.xlu0
    %v806 = vpop.trf.xlu0
    %v807 = vpop.trf.xlu0
    %v808 = vpop.trf.xlu0
    %v809 = vpop.trf.xlu0
    %v810 = vpop.trf.xlu0
    %v811 = vpop.trf.xlu0
    %v812 = vpop.trf.xlu0
    %v813 = vpop.trf.xlu0
    %v814 = vpop.trf.xlu0
    %v815 = vpop.trf.xlu0
    %v816 = vpop.trf.xlu0
    %v817 = vpop.trf.xlu0
    %v818 = vpop.trf.xlu0
    %v820 = vsel %vm56, %v803, 0
    %822 = vmatprep.subr.mxu0 0.0
    %823 = vmatpush1.msra.mxu0 0.0
    %824 = vmatprep.subr.mxu0 0.0
    %825 = vmatpush1.msra.mxu0 0.0
    %826 = vmatprep.subr.mxu0 0.0
    %827 = vmatpush1.msra.mxu0 0.0
    %828 = vmatprep.subr.mxu0 0.0
    %829 = vmatpush1.msra.mxu0 0.0
    %830 = vmatprep.subr.mxu0 0.0
    %831 = vmatpush1.msra.mxu0 0.0
    %832 = vmatprep.subr.mxu0 0.0
    %833 = vmatpush1.msra.mxu0 0.0
    %834 = vmatprep.subr.mxu0 0.0
    %835 = vmatpush1.msra.mxu0 0.0
    %836 = vmatprep.subr.mxu0 0.0
    %837 = vmatpush1.msra.mxu0 0.0
    %838 = vmatprep.subr.mxu0 0.0
    %839 = vmatpush1.msra.mxu0 %v55
    %840 = vmatprep.subr.mxu0 0.0
    %841 = vmatpush1.msra.mxu0 %v54
    %842 = vmatprep.subr.mxu0 0.0
    %843 = vmatpush1.msra.mxu0 %v53
    %844 = vmatprep.subr.mxu0 0.0
    %845 = vmatpush1.msra.mxu0 %v52
    %846 = vmatprep.subr.mxu0 0.0
    %847 = vmatpush1.msra.mxu0 %v51
    %848 = vmatprep.subr.mxu0 0.0
    %849 = vmatpush1.msra.mxu0 %v50
    %850 = vmatprep.subr.mxu0 0.0
    %851 = vmatpush1.msra.mxu0 %v49
    %852 = vmatprep.subr.mxu0 0.0
    %853 = vmatpush1.msra.mxu0 %v48
    %854 = vmatprep.subr.mxu0 0.0
    %855 = vmatpush2.msra.mxu0 0.0
    %856 = vmatprep.subr.mxu0 0.0
    %857 = vmatpush2.msra.mxu0 0.0
    %858 = vmatprep.subr.mxu0 0.0
    %859 = vmatpush2.msra.mxu0 0.0
    %860 = vmatprep.subr.mxu0 0.0
    %861 = vmatpush2.msra.mxu0 0.0
    %862 = vmatprep.subr.mxu0 0.0
    %863 = vmatpush2.msra.mxu0 0.0
    %864 = vmatprep.subr.mxu0 0.0
    %865 = vmatpush2.msra.mxu0 0.0
    %866 = vmatprep.subr.mxu0 0.0
    %867 = vmatpush2.msra.mxu0 0.0
    %868 = vmatprep.subr.mxu0 0.0
    %869 = vmatpush2.msra.mxu0 0.0
    %870 = vmatprep.subr.mxu0 0.0
    %871 = vmatpush2.msra.mxu0 0.0
    %872 = vmatprep.subr.mxu0 0.0
    %873 = vmatpush2.msra.mxu0 0.0
    %874 = vmatprep.subr.mxu0 0.0
    %875 = vmatpush2.msra.mxu0 0.0
    %876 = vmatprep.subr.mxu0 0.0
    %877 = vmatpush2.msra.mxu0 0.0
    %878 = vmatprep.subr.mxu0 0.0
    %879 = vmatpush2.msra.mxu0 0.0
    %880 = vmatprep.subr.mxu0 0.0
    %881 = vmatpush2.msra.mxu0 0.0
    %882 = vmatprep.subr.mxu0 0.0
    %883 = vmatpush2.msra.mxu0 0.0
    %884 = vmatprep.subr.mxu0 0.0
    %885 = vmatpush2.msra.mxu0 0.0
    %886 = vmatprep.mubr.f32.mxu0 0.0
    %887 = vmatmul.mubr.f32.gmra.mxu0 %v820
    %v888 = vpop.f32.mrf.mxu0
    %v889 = vadd.f32 0.0, %v888
    %v890 = vpop.f32.mrf.mxu0
    %891 = vdwg.mxu0
    %892 = vst.msk [vmem:[#allocation2] sm:$0xff] %vm98, %v889
    %893 = vmatprep.subr.mxu0 0.0
    %894 = vmatpush1.msra.mxu0 0.0
    %895 = vmatprep.subr.mxu0 0.0
    %896 = vmatpush1.msra.mxu0 0.0
    %897 = vmatprep.subr.mxu0 0.0
    %898 = vmatpush1.msra.mxu0 0.0
    %899 = vmatprep.subr.mxu0 0.0
    %900 = vmatpush1.msra.mxu0 0.0
    %901 = vmatprep.subr.mxu0 0.0
    %902 = vmatpush1.msra.mxu0 0.0
    %903 = vmatprep.subr.mxu0 0.0
    %904 = vmatpush1.msra.mxu0 0.0
    %905 = vmatprep.subr.mxu0 0.0
    %906 = vmatpush1.msra.mxu0 0.0
    %907 = vmatprep.subr.mxu0 0.0
    %908 = vmatpush1.msra.mxu0 0.0
    %909 = vmatprep.subr.mxu0 0.0
    %910 = vmatpush1.msra.mxu0 %v47
    %911 = vmatprep.subr.mxu0 0.0
    %912 = vmatpush1.msra.mxu0 %v46
    %913 = vmatprep.subr.mxu0 0.0
    %914 = vmatpush1.msra.mxu0 %v45
    %915 = vmatprep.subr.mxu0 0.0
    %916 = vmatpush1.msra.mxu0 %v44
    %917 = vmatprep.subr.mxu0 0.0
    %918 = vmatpush1.msra.mxu0 %v43
    %919 = vmatprep.subr.mxu0 0.0
    %920 = vmatpush1.msra.mxu0 %v42
    %921 = vmatprep.subr.mxu0 0.0
    %922 = vmatpush1.msra.mxu0 %v41
    %923 = vmatprep.subr.mxu0 0.0
    %924 = vmatpush1.msra.mxu0 %v40
    %925 = vmatprep.subr.mxu0 0.0
    %926 = vmatpush2.msra.mxu0 0.0
    %927 = vmatprep.subr.mxu0 0.0
    %928 = vmatpush2.msra.mxu0 0.0
    %929 = vmatprep.subr.mxu0 0.0
    %930 = vmatpush2.msra.mxu0 0.0
    %931 = vmatprep.subr.mxu0 0.0
    %932 = vmatpush2.msra.mxu0 0.0
    %933 = vmatprep.subr.mxu0 0.0
    %934 = vmatpush2.msra.mxu0 0.0
    %935 = vmatprep.subr.mxu0 0.0
    %936 = vmatpush2.msra.mxu0 0.0
    %937 = vmatprep.subr.mxu0 0.0
    %938 = vmatpush2.msra.mxu0 0.0
    %939 = vmatprep.subr.mxu0 0.0
    %940 = vmatpush2.msra.mxu0 0.0
    %941 = vmatprep.subr.mxu0 0.0
    %942 = vmatpush2.msra.mxu0 0.0
    %943 = vmatprep.subr.mxu0 0.0
    %944 = vmatpush2.msra.mxu0 0.0
    %945 = vmatprep.subr.mxu0 0.0
    %946 = vmatpush2.msra.mxu0 0.0
    %947 = vmatprep.subr.mxu0 0.0
    %948 = vmatpush2.msra.mxu0 0.0
    %949 = vmatprep.subr.mxu0 0.0
    %950 = vmatpush2.msra.mxu0 0.0
    %951 = vmatprep.subr.mxu0 0.0
    %952 = vmatpush2.msra.mxu0 0.0
    %953 = vmatprep.subr.mxu0 0.0
    %954 = vmatpush2.msra.mxu0 0.0
    %955 = vmatprep.subr.mxu0 0.0
    %956 = vmatpush2.msra.mxu0 0.0
    %957 = vmatprep.mubr.f32.mxu0 0.0
    %958 = vmatmul.mubr.f32.gmra.mxu0 %v820
    %v959 = vpop.f32.mrf.mxu0
    %v960 = vadd.f32 0.0, %v959
    %v961 = vpop.f32.mrf.mxu0
    %962 = vdwg.mxu0
    %v964 = vsel %vm56, %v960, 0
    %966 = vmatprep.subr.mxu0 0.0
    %967 = vmatpush1.msra.mxu0 0.0
    %968 = vmatprep.subr.mxu0 0.0
    %969 = vmatpush1.msra.mxu0 0.0
    %970 = vmatprep.subr.mxu0 0.0
    %971 = vmatpush1.msra.mxu0 0.0
    %972 = vmatprep.subr.mxu0 0.0
    %973 = vmatpush1.msra.mxu0 0.0
    %974 = vmatprep.subr.mxu0 0.0
    %975 = vmatpush1.msra.mxu0 0.0
    %976 = vmatprep.subr.mxu0 0.0
    %977 = vmatpush1.msra.mxu0 0.0
    %978 = vmatprep.subr.mxu0 0.0
    %979 = vmatpush1.msra.mxu0 0.0
    %980 = vmatprep.subr.mxu0 0.0
    %981 = vmatpush1.msra.mxu0 0.0
    %982 = vmatprep.subr.mxu0 0.0
    %983 = vmatpush1.msra.mxu0 %v630
    %984 = vmatprep.subr.mxu0 0.0
    %985 = vmatpush1.msra.mxu0 %v628
    %986 = vmatprep.subr.mxu0 0.0
    %987 = vmatpush1.msra.mxu0 %v626
    %988 = vmatprep.subr.mxu0 0.0
    %989 = vmatpush1.msra.mxu0 %v624
    %990 = vmatprep.subr.mxu0 0.0
    %991 = vmatpush1.msra.mxu0 %v622
    %992 = vmatprep.subr.mxu0 0.0
    %993 = vmatpush1.msra.mxu0 %v620
    %994 = vmatprep.subr.mxu0 0.0
    %995 = vmatpush1.msra.mxu0 %v618
    %996 = vmatprep.subr.mxu0 0.0
    %997 = vmatpush1.msra.mxu0 %v616
    %998 = vmatprep.subr.mxu0 0.0
    %999 = vmatpush2.msra.mxu0 0.0
    %1000 = vmatprep.subr.mxu0 0.0
    %1001 = vmatpush2.msra.mxu0 0.0
    %1002 = vmatprep.subr.mxu0 0.0
    %1003 = vmatpush2.msra.mxu0 0.0
    %1004 = vmatprep.subr.mxu0 0.0
    %1005 = vmatpush2.msra.mxu0 0.0
    %1006 = vmatprep.subr.mxu0 0.0
    %1007 = vmatpush2.msra.mxu0 0.0
    %1008 = vmatprep.subr.mxu0 0.0
    %1009 = vmatpush2.msra.mxu0 0.0
    %1010 = vmatprep.subr.mxu0 0.0
    %1011 = vmatpush2.msra.mxu0 0.0
    %1012 = vmatprep.subr.mxu0 0.0
    %1013 = vmatpush2.msra.mxu0 0.0
    %1014 = vmatprep.subr.mxu0 0.0
    %1015 = vmatpush2.msra.mxu0 0.0
    %1016 = vmatprep.subr.mxu0 0.0
    %1017 = vmatpush2.msra.mxu0 0.0
    %1018 = vmatprep.subr.mxu0 0.0
    %1019 = vmatpush2.msra.mxu0 0.0
    %1020 = vmatprep.subr.mxu0 0.0
    %1021 = vmatpush2.msra.mxu0 0.0
    %1022 = vmatprep.subr.mxu0 0.0
    %1023 = vmatpush2.msra.mxu0 0.0
    %1024 = vmatprep.subr.mxu0 0.0
    %1025 = vmatpush2.msra.mxu0 0.0
    %1026 = vmatprep.subr.mxu0 0.0
    %1027 = vmatpush2.msra.mxu0 0.0
    %1028 = vmatprep.subr.mxu0 0.0
    %1029 = vmatpush2.msra.mxu0 0.0
    %1030 = vmatprep.mubr.f32.mxu0 0.0
    %1031 = vmatmul.mubr.f32.gmra.mxu0 %v964
    %v1032 = vpop.f32.mrf.mxu0
    %v1033 = vadd.f32 0.0, %v1032
    %v1034 = vpop.f32.mrf.mxu0
    %1035 = vdwg.mxu0
    %1036 = vst.msk [vmem:[#allocation4] sm:$0xff] %vm98, %v1033
    %v1038 = vsel %vm98, %v616, 0
    %v1041 = vsel %vm98, %v618, 0
    %v1044 = vsel %vm98, %v620, 0
    %v1047 = vsel %vm98, %v622, 0
    %v1050 = vsel %vm98, %v624, 0
    %v1053 = vsel %vm98, %v626, 0
    %v1056 = vsel %vm98, %v628, 0
    %v1059 = vsel %vm98, %v630, 0
    %1061 = vmatprep.subr.mxu0 0.0
    %1062 = vmatpush1.xpose.msra.mxu0 0.0
    %1063 = vmatprep.subr.mxu0 0.0
    %1064 = vmatpush1.xpose.msra.mxu0 0.0
    %1065 = vmatprep.subr.mxu0 0.0
    %1066 = vmatpush1.xpose.msra.mxu0 0.0
    %1067 = vmatprep.subr.mxu0 0.0
    %1068 = vmatpush1.xpose.msra.mxu0 0.0
    %1069 = vmatprep.subr.mxu0 0.0
    %1070 = vmatpush1.xpose.msra.mxu0 0.0
    %1071 = vmatprep.subr.mxu0 0.0
    %1072 = vmatpush1.xpose.msra.mxu0 0.0
    %1073 = vmatprep.subr.mxu0 0.0
    %1074 = vmatpush1.xpose.msra.mxu0 0.0
    %1075 = vmatprep.subr.mxu0 0.0
    %1076 = vmatpush1.xpose.msra.mxu0 0.0
    %1077 = vmatprep.subr.mxu0 0.0
    %1078 = vmatpush1.xpose.msra.mxu0 %v1059
    %1079 = vmatprep.subr.mxu0 0.0
    %1080 = vmatpush1.xpose.msra.mxu0 %v1056
    %1081 = vmatprep.subr.mxu0 0.0
    %1082 = vmatpush1.xpose.msra.mxu0 %v1053
    %1083 = vmatprep.subr.mxu0 0.0
    %1084 = vmatpush1.xpose.msra.mxu0 %v1050
    %1085 = vmatprep.subr.mxu0 0.0
    %1086 = vmatpush1.xpose.msra.mxu0 %v1047
    %1087 = vmatprep.subr.mxu0 0.0
    %1088 = vmatpush1.xpose.msra.mxu0 %v1044
    %1089 = vmatprep.subr.mxu0 0.0
    %1090 = vmatpush1.xpose.msra.mxu0 %v1041
    %1091 = vmatprep.subr.mxu0 0.0
    %1092 = vmatpush1.xpose.msra.mxu0 %v1038
    %1093 = vmatprep.subr.mxu0 0.0
    %1094 = vmatpush2.xpose.msra.mxu0 0.0
    %1095 = vmatprep.subr.mxu0 0.0
    %1096 = vmatpush2.xpose.msra.mxu0 0.0
    %1097 = vmatprep.subr.mxu0 0.0
    %1098 = vmatpush2.xpose.msra.mxu0 0.0
    %1099 = vmatprep.subr.mxu0 0.0
    %1100 = vmatpush2.xpose.msra.mxu0 0.0
    %1101 = vmatprep.subr.mxu0 0.0
    %1102 = vmatpush2.xpose.msra.mxu0 0.0
    %1103 = vmatprep.subr.mxu0 0.0
    %1104 = vmatpush2.xpose.msra.mxu0 0.0
    %1105 = vmatprep.subr.mxu0 0.0
    %1106 = vmatpush2.xpose.msra.mxu0 0.0
    %1107 = vmatprep.subr.mxu0 0.0
    %1108 = vmatpush2.xpose.msra.mxu0 0.0
    %1109 = vmatprep.subr.mxu0 0.0
    %1110 = vmatpush2.xpose.msra.mxu0 0.0
    %1111 = vmatprep.subr.mxu0 0.0
    %1112 = vmatpush2.xpose.msra.mxu0 0.0
    %1113 = vmatprep.subr.mxu0 0.0
    %1114 = vmatpush2.xpose.msra.mxu0 0.0
    %1115 = vmatprep.subr.mxu0 0.0
    %1116 = vmatpush2.xpose.msra.mxu0 0.0
    %1117 = vmatprep.subr.mxu0 0.0
    %1118 = vmatpush2.xpose.msra.mxu0 0.0
    %1119 = vmatprep.subr.mxu0 0.0
    %1120 = vmatpush2.xpose.msra.mxu0 0.0
    %1121 = vmatprep.subr.mxu0 0.0
    %1122 = vmatpush2.xpose.msra.mxu0 0.0
    %1123 = vmatprep.subr.mxu0 0.0
    %1124 = vmatpush2.xpose.msra.mxu0 0.0
    %1125 = vmatprep.mubr.f32.mxu0 0.0
    %1126 = vmatmul.mubr.f32.gmra.mxu0 %v1038
    %v1127 = vpop.f32.mrf.mxu0
    %v1128 = vadd.f32 0.0, %v1127
    %v1129 = vpop.f32.mrf.mxu0
    %1130 = vmatprep.mubr.f32.mxu0 0.0
    %1131 = vmatmul.mubr.f32.gmra.mxu0 %v1041
    %v1132 = vpop.f32.mrf.mxu0
    %v1133 = vadd.f32 0.0, %v1132
    %v1134 = vpop.f32.mrf.mxu0
    %1135 = vmatprep.mubr.f32.mxu0 0.0
    %1136 = vmatmul.mubr.f32.gmra.mxu0 %v1044
    %v1137 = vpop.f32.mrf.mxu0
    %v1138 = vadd.f32 0.0, %v1137
    %v1139 = vpop.f32.mrf.mxu0
    %1140 = vmatprep.mubr.f32.mxu0 0.0
    %1141 = vmatmul.mubr.f32.gmra.mxu0 %v1047
    %v1142 = vpop.f32.mrf.mxu0
    %v1143 = vadd.f32 0.0, %v1142
    %v1144 = vpop.f32.mrf.mxu0
    %1145 = vmatprep.mubr.f32.mxu0 0.0
    %1146 = vmatmul.mubr.f32.gmra.mxu0 %v1050
    %v1147 = vpop.f32.mrf.mxu0
    %v1148 = vadd.f32 0.0, %v1147
    %v1149 = vpop.f32.mrf.mxu0
    %1150 = vmatprep.mubr.f32.mxu0 0.0
    %1151 = vmatmul.mubr.f32.gmra.mxu0 %v1053
    %v1152 = vpop.f32.mrf.mxu0
    %v1153 = vadd.f32 0.0, %v1152
    %v1154 = vpop.f32.mrf.mxu0
    %1155 = vmatprep.mubr.f32.mxu0 0.0
    %1156 = vmatmul.mubr.f32.gmra.mxu0 %v1056
    %v1157 = vpop.f32.mrf.mxu0
    %v1158 = vadd.f32 0.0, %v1157
    %v1159 = vpop.f32.mrf.mxu0
    %1160 = vmatprep.mubr.f32.mxu0 0.0
    %1161 = vmatmul.mubr.f32.gmra.mxu0 %v1059
    %v1162 = vpop.f32.mrf.mxu0
    %v1163 = vadd.f32 0.0, %v1162
    %v1164 = vpop.f32.mrf.mxu0
    %1165 = vdwg.mxu0
    %v1166 = vsub.f32 %v1128, %v40
    %v1167 = vsub.f32 %v1133, %v41
    %v1168 = vsub.f32 %v1138, %v42
    %v1169 = vsub.f32 %v1143, %v43
    %v1170 = vsub.f32 %v1148, %v44
    %v1171 = vsub.f32 %v1153, %v45
    %v1172 = vsub.f32 %v1158, %v46
    %v1173 = vsub.f32 %v1163, %v47
    %v1174 = vmul.f32 %v1166, %v1166
    %v1175 = vmul.f32 %v1167, %v1167
    %v1176 = vmul.f32 %v1168, %v1168
    %v1177 = vmul.f32 %v1169, %v1169
    %v1178 = vmul.f32 %v1170, %v1170
    %v1179 = vmul.f32 %v1171, %v1171
    %v1180 = vmul.f32 %v1172, %v1172
    %v1181 = vmul.f32 %v1173, %v1173
    %v1182 = vsel %vm56, %v1174, 0.0
    %v1183 = vsel %vm56, %v1175, 0.0
    %v1184 = vadd.f32 %v1182, %v1183
    %v1185 = vsel %vm56, %v1176, 0.0
    %v1186 = vadd.f32 %v1184, %v1185
    %v1187 = vsel %vm56, %v1177, 0.0
    %v1188 = vadd.f32 %v1186, %v1187
    %v1189 = vsel %vm56, %v1178, 0.0
    %v1190 = vadd.f32 %v1188, %v1189
    %v1191 = vsel %vm56, %v1179, 0.0
    %v1192 = vadd.f32 %v1190, %v1191
    %v1193 = vsel %vm56, %v1180, 0.0
    %v1194 = vadd.f32 %v1192, %v1193
    %v1195 = vsel %vm56, %v1181, 0.0
    %v1196 = vadd.f32 %v1194, %v1195
    %1197 = vadd.xlane.f32.xlu0 %v1196
    %v1198 = vpop.xlane.xlu0 %1197
    %v1199 = vrot.slane %v1198, 4
    %v1200 = vadd.f32 %v1198, %v1199
    %v1201 = vrot.slane %v1200, 2
    %v1202 = vadd.f32 %v1200, %v1201
    %v1203 = vrot.slane %v1202, 1
    %v1204 = vadd.f32 %v1202, %v1203
    %s1205 = vtos %v1204
    %v1206 = vstv %s1205
    %v1207 = vrsqrt.pop %v1206
    %v1208 = vmul.f32 %v1206, %v1207
    %vm1209 = vcmp.eq.f32.partialorder %v1206, inf
    %v1210 = vsel %vm1209, %v1206, %v1208
    %vm1211 = vcmp.eq.f32.partialorder %v1206, 0.0
    %v1212 = vand.u32 %v1206, 2147483648
    %v1213 = vsel %vm1211, %v1212, %v1210
    %1214 = vst.msk [vmem:[#allocation7] sm:$0x1] %vm785, %v1213
    // Predicated region
    $region26: #{tpu_custom_call.1} parent=1 // pred_check
      _
    $region27: #{tpu_custom_call.1} parent=1 // pred_check_branch
      %1216 = sbr.rel (0) target = $region29
    $region28: #{tpu_custom_call.1} parent=1 // pred_region
      _
    $region29: #{tpu_custom_call.1} parent=1 // pred_fallthru
      _
    // Predicated region
    $region30: #{tpu_custom_call.1} parent=1 // pred_check
      _
    $region31: #{tpu_custom_call.1} parent=1 // pred_check_branch
      %1218 = sbr.rel (0) target = $region33
    $region32: #{tpu_custom_call.1} parent=1 // pred_region
      _
    $region33: #{tpu_custom_call.1} parent=1 // pred_fallthru
      _
    // Predicated region
    $region34: #{tpu_custom_call.1} parent=1 // pred_check
      _
    $region35: #{tpu_custom_call.1} parent=1 // pred_check_branch
      %1220 = sbr.rel (0) target = $region37
    $region36: #{tpu_custom_call.1} parent=1 // pred_region
      %s1222 = ssub.s32 128, 128
      %1223 = vsyncadd [#allocation3], %s1222
      %s1225 = sshll.u32 [#allocation2], 4
      %s1226 = int_to_ptr.vmem [resolvable:$true] %s1225
      %1228 = dma.vmem_to_hbm [thread:$0]  %s1226, 128, %s8, [#allocation3]
    $region37: #{tpu_custom_call.1} parent=1 // pred_fallthru
      _
    // Predicated region
    $region38: #{tpu_custom_call.1} parent=1 // pred_check
      _
    $region39: #{tpu_custom_call.1} parent=1 // pred_check_branch
      %1230 = sbr.rel (0) target = $region41
    $region40: #{tpu_custom_call.1} parent=1 // pred_region
      %s1232 = ssub.s32 128, 128
      %1233 = vsyncadd [#allocation5], %s1232
      %s1235 = sshll.u32 [#allocation4], 4
      %s1236 = int_to_ptr.vmem [resolvable:$true] %s1235
      %1238 = dma.vmem_to_hbm [thread:$0]  %s1236, 128, %s9, [#allocation5]
    $region41: #{tpu_custom_call.1} parent=1 // pred_fallthru
      _
    // Predicated region
    $region42: #{tpu_custom_call.1} parent=1 // pred_check
      _
    $region43: #{tpu_custom_call.1} parent=1 // pred_check_branch
      %1240 = sbr.rel (0) target = $region45
    $region44: #{tpu_custom_call.1} parent=1 // pred_region
      %s1242 = ssub.s32 16, 16
      %1243 = vsyncadd [#allocation5], %s1242
      %s1245 = sshll.u32 [#allocation6], 4
      %s1246 = int_to_ptr.vmem [resolvable:$true] %s1245
      %1248 = dma.vmem_to_hbm [thread:$0]  %s1246, 16, %s10, [#allocation5]
    $region45: #{tpu_custom_call.1} parent=1 // pred_fallthru
      _
    // Predicated region
    $region46: #{tpu_custom_call.1} parent=1 // pred_check
      _
    $region47: #{tpu_custom_call.1} parent=1 // pred_check_branch
      %1250 = sbr.rel (0) target = $region49
    $region48: #{tpu_custom_call.1} parent=1 // pred_region
      %s1252 = ssub.s32 16, 16
      %1253 = vsyncadd [#allocation8], %s1252
      %s1255 = sshll.u32 [#allocation7], 4
      %s1256 = int_to_ptr.vmem [resolvable:$true] %s1255
      %1258 = dma.vmem_to_hbm [thread:$0]  %s1256, 16, %s11, [#allocation8]
    $region49: #{tpu_custom_call.1} parent=1 // pred_fallthru
      _
    // Predicated region
    $region50: #{tpu_custom_call.1} parent=1 // pred_check
      _
    $region51: #{tpu_custom_call.1} parent=1 // pred_check_branch
      %1260 = sbr.rel (0) target = $region53
    $region52: #{tpu_custom_call.1} parent=1 // pred_region
      _
    $region53: #{tpu_custom_call.1} parent=1 // pred_fallthru
      _
    // Predicated region
    $region54: #{tpu_custom_call.1} parent=1 // pred_check
      _
    $region55: #{tpu_custom_call.1} parent=1 // pred_check_branch
      %1262 = sbr.rel (0) target = $region57
    $region56: #{tpu_custom_call.1} parent=1 // pred_region
      _
    $region57: #{tpu_custom_call.1} parent=1 // pred_fallthru
      _
    // Predicated region
    $region58: #{tpu_custom_call.1} parent=1 // pred_check
      _
    $region59: #{tpu_custom_call.1} parent=1 // pred_check_branch
      %1264 = sbr.rel (0) target = $region61
    $region60: #{tpu_custom_call.1} parent=1 // pred_region
      %1265 = dma.done [#allocation3], 128
    $region61: #{tpu_custom_call.1} parent=1 // pred_fallthru
      _
    // Predicated region
    $region62: #{tpu_custom_call.1} parent=1 // pred_check
      _
    $region63: #{tpu_custom_call.1} parent=1 // pred_check_branch
      %1267 = sbr.rel (0) target = $region65
    $region64: #{tpu_custom_call.1} parent=1 // pred_region
      %1268 = dma.done [#allocation5], 128
    $region65: #{tpu_custom_call.1} parent=1 // pred_fallthru
      _
    // Predicated region
    $region66: #{tpu_custom_call.1} parent=1 // pred_check
      _
    $region67: #{tpu_custom_call.1} parent=1 // pred_check_branch
      %1270 = sbr.rel (0) target = $region69
    $region68: #{tpu_custom_call.1} parent=1 // pred_region
      %1271 = dma.done [#allocation5], 16
    $region69: #{tpu_custom_call.1} parent=1 // pred_fallthru
      _
    // Predicated region
    $region70: #{tpu_custom_call.1} parent=1 // pred_check
      _
    $region71: #{tpu_custom_call.1} parent=1 // pred_check_branch
      %1273 = sbr.rel (0) target = $region73
    $region72: #{tpu_custom_call.1} parent=1 // pred_region
      %1274 = dma.done [#allocation8], 16
    $region73: #{tpu_custom_call.1} parent=1 // pred_fallthru
      _
    %1275 = vsyncpa [#allocation3], 1
    %1276 = vsyncpa [#allocation5], 1
    %1277 = vsyncpa [#allocation8], 1

</llo_original>
